<compile_context>
chip_gen: v7x
topology: tpu7x:2x2x1
jax: 0.10.0
libtpu: 0.0.40
codegen_flags: <defaults>
</compile_context>

<pallas_src>
import math

import jax
import jax.numpy as jnp
from jax.experimental import pallas as pl
from jax.experimental.pallas import tpu as pltpu

MAX_SEQ = 20  # fbgemm.jagged_2d_to_dense max_sequence_length=20


def _seq_embedding_gather_kernel(ids_ref, tbl_ref, out_ref):
    """One grid step gathers TB batch rows x all features x MAX_SEQ positions.

    ids_ref: (1, M4, P) int32    adjusted table rows (0 = zero/padding row);
                                 lane p of row r is the p-th packed seq position.
    tbl_ref: (T, P*n_rows, P*D) bfloat16  hi/lo bf16 split terms of the
                                 block-diagonal replicated table.
    out_ref: (M4, P*D) float32   lane-dense output block (P*D == 128 if D | 128).
    """
    ids = ids_ref[0]                                  # (M4, P) int32
    m4, pack = ids.shape
    n_rows = tbl_ref.shape[1] // pack

    # One-hot gather matrix in bf16 (0/1 exact).  Each packed slot p is only
    # compared against its own n_rows-wide column band, so the compare work is
    # one compare per (id, table row); the bands are 256-lane aligned so the
    # concat is layout-trivial.
    col = jax.lax.broadcasted_iota(jnp.int32, (m4, n_rows), 1)
    parts = [(col == ids[:, p:p + 1]).astype(jnp.bfloat16) for p in range(pack)]
    onehot = parts[0] if pack == 1 else jnp.concatenate(parts, axis=1)

    # 1-3 single-pass bf16 MXU matmuls, f32 accumulation (vs ~6 passes for a
    # Precision.HIGHEST f32 dot).  The block-diagonal table drops slot p's
    # embedding into output lanes [p*D, (p+1)*D), i.e. the MXU assembles the
    # lane-dense output rows for free.
    acc = jnp.dot(onehot, tbl_ref[0], preferred_element_type=jnp.float32)
    for t in range(1, tbl_ref.shape[0]):
        acc = acc + jnp.dot(onehot, tbl_ref[t], preferred_element_type=jnp.float32)
    out_ref[...] = acc


def _invariant_block_spec(block_shape, index_map):
    """Spec for a grid-invariant input: fetched once, single-buffered if supported."""
    try:
        return pl.BlockSpec(block_shape, index_map, pipeline_mode=pl.Buffered(1))
    except Exception:  # older API without pipeline_mode: default buffering still correct
        return pl.BlockSpec(block_shape, index_map)


def _vmem_capacity_bytes():
    try:
        return int(pltpu.get_tpu_info().vmem_capacity_bytes)
    except Exception:
        return 64 * 1024 * 1024  # conservative: v7x per-TensorCore VMEM


def prepare_embedding_tables(tables, embedding_dim, max_seq=MAX_SEQ, split_terms=3):
    """One-time (per weight update) table prep, hoisted out of the forward path.

    split_terms: 3 -> f32-exact gather (~2^-24 rel error), 2 -> ~2^-16,
                 1 -> plain bf16-rounded embeddings.
    """
    D = int(embedding_dim)
    F = len(tables)

    # Lane-pack factor: P consecutive sequence positions per output row so the
    # kernel's output block last dim is P*D == 128 lanes when possible.
    if 128 % D == 0:
        P = 128 // D
        while P > 1 and max_seq % P:
            P //= 2
    else:
        P = 1

    # Concatenated rows: [zero padding row] + per-feature tables.
    row_offsets, sizes, off = [], [], 1
    for t in tables:
        assert t.shape[1] == D
        row_offsets.append(off)
        sizes.append(t.shape[0])
        off += t.shape[0]
    n_rows = off
    # Pad K to the MXU tile: 256 covers v6e/v7x and is also a multiple of v5e's 128.
    n_rows_pad = ((n_rows + 255) // 256) * 256

    base = jnp.concatenate(
        [jnp.zeros((1, D), jnp.float32)]
        + [t.astype(jnp.float32) for t in tables]
        + [jnp.zeros((n_rows_pad - n_rows, D), jnp.float32)],
        axis=0,
    )                                                     # (n_rows_pad, D) f32

    # bf16 hi/lo split of the table (sum of terms == f32 table).
    terms, resid = [], base
    for _ in range(max(1, int(split_terms))):
        hi = resid.astype(jnp.bfloat16)
        terms.append(hi)
        resid = resid - hi.astype(jnp.float32)

    # Block-diagonal P-way replication: one-hot column band p maps the embedding
    # for packed slot p into output lanes [p*D, (p+1)*D).
    eye = jnp.eye(P, dtype=jnp.bfloat16)
    tbl_terms = jnp.stack([jnp.kron(eye, t) for t in terms], axis=0)  # (T, P*n_rows_pad, P*D)

    return {
        "tbl_terms": tbl_terms,
        "row_offsets": jnp.asarray(row_offsets, jnp.int32),   # (F,)
        "table_sizes": jnp.asarray(sizes, jnp.int32),          # (F,)
        "n_rows_pad": n_rows_pad,
        "pack": P,
        "embedding_dim": D,
        "num_features": F,
        "max_seq": max_seq,
    }


def sequence_sparse_arch_forward(prepared, ids_padded, lengths, batch_tile=64):
    """TestSequenceSparseArch.forward.

    ids_padded: (F, B, MAX_SEQ) int32 (positions beyond `lengths` are ignored).
    lengths:    (F, B) int32.
    Returns:    (B, F * MAX_SEQ * embedding_dim) float32.
    """
    F, B, S = ids_padded.shape
    assert F == prepared["num_features"] and S == prepared["max_seq"]
    D = prepared["embedding_dim"]
    P = prepared["pack"]
    G = S // P
    tbl_terms = prepared["tbl_terms"]
    T, N4, PD = tbl_terms.shape

    # ---- id preprocessing (tiny elementwise XLA ops) -------------------------
    ids = ids_padded.astype(jnp.int32)
    # torch EmbeddingCollection would raise on out-of-range ids; clamp so a bad
    # id can at worst repeat a row of its *own* table, never another feature's.
    ids = jnp.clip(ids, 0, (prepared["table_sizes"] - 1)[:, None, None])
    valid = jnp.arange(S, dtype=jnp.int32)[None, None, :] < lengths[:, :, None]
    # invalid / padded positions -> row 0 (zero row) == jagged zero padding.
    ids = jnp.where(valid, ids + prepared["row_offsets"][:, None, None], 0)  # (F,B,S)
    ids = jnp.transpose(ids, (1, 0, 2))                                      # (B,F,S)

    # ---- batch tiling --------------------------------------------------------
    rows_per_b = F * G                                   # packed output rows / batch elem
    align_b = 8 // math.gcd(8, rows_per_b)               # keep blocks 8-sublane aligned
    tb = max(align_b, (min(batch_tile, B) // align_b) * align_b)
    if (B + tb - 1) // tb == 1 and B >= 2 * align_b:
        # keep >=2 grid blocks so the "parallel" axis can feed both v7x TensorCores
        tb = max(align_b, ((B // 2) // align_b) * align_b)
    B_pad = ((B + tb - 1) // tb) * tb
    nb = B_pad // tb
    M4 = tb * rows_per_b                                 # output rows per grid step

    if B_pad != B:                                       # padded rows gather the zero row
        ids = jnp.pad(ids, ((0, B_pad - B), (0, 0), (0, 0)))
    ids = ids.reshape(nb, M4, P)                         # P ids per packed output row

    # ---- per-generation VMEM budget + crossover guard ------------------------
    vmem_cap = _vmem_capacity_bytes()
    tbl_bytes = T * N4 * PD * 2                          # bf16 table, single-buffered
    out_blk_bytes = M4 * PD * 4
    ids_blk_bytes = M4 * 128 * 4                         # lane-padded int32 tile
    work_bytes = M4 * N4 * (2 + 4) + M4 * PD * 4         # one-hot + iota + f32 acc
    need = tbl_bytes + 2 * (out_blk_bytes + ids_blk_bytes) + work_bytes
    if need > (vmem_cap * 3) // 4:
        # TODO(synk): switch to memory_space=pl.ANY + pltpu.make_async_copy row
        # gather (double-buffered) for tables too large for the VMEM regime.
        raise NotImplementedError(
            f"table too large for the VMEM-resident one-hot gather "
            f"(~{need >> 20} MiB needed of ~{vmem_cap >> 20} MiB VMEM)")
    vmem_limit = int(min((vmem_cap * 3) // 4, max(need + (8 << 20), 32 << 20)))

    out = pl.pallas_call(
        _seq_embedding_gather_kernel,
        out_shape=jax.ShapeDtypeStruct((B_pad * rows_per_b, PD), jnp.float32),
        grid=(nb,),
        in_specs=[
            pl.BlockSpec((1, M4, P), lambda bb: (bb, 0, 0)),
            # whole gather table stays resident: constant block index, 1 buffer
            _invariant_block_spec((T, N4, PD), lambda bb: (0, 0, 0)),
        ],
        out_specs=pl.BlockSpec((M4, PD), lambda bb: (bb, 0)),
        compiler_params=pltpu.CompilerParams(
            dimension_semantics=("parallel",),
            vmem_limit_bytes=vmem_limit,
        ),
    )(ids, tbl_terms)

    # (B_pad*F*G, P*D) is already (b, f, s, d) row-major -> free reshape; drop pad.
    return out.reshape(B_pad, F * S * D)[:B]


if __name__ == "__main__":
    key = jax.random.PRNGKey(0)
    B = 2                         # batch
    D = 32                        # embedding_dim (shared across tables, as in EC)
    num_embeddings = [100, 120]   # two EmbeddingConfig tables / two feature names
    F = len(num_embeddings)

    k_t, k_ids, k_len = jax.random.split(key, 3)
    table_keys = jax.random.split(k_t, F)
    tables = [
        jax.random.normal(table_keys[i], (num_embeddings[i], D), jnp.float32)
        for i in range(F)
    ]
    lengths = jax.random.randint(k_len, (F, B), 0, MAX_SEQ + 1, dtype=jnp.int32)
    id_keys = jax.random.split(k_ids, F)
    ids_padded = jnp.stack(
        [jax.random.randint(id_keys[f], (B, MAX_SEQ), 0, num_embeddings[f],
                            dtype=jnp.int32) for f in range(F)],
        axis=0,
    )                                                       # (F, B, MAX_SEQ)

    # Table prep hoisted out of the per-forward path (and out of the jit).
    prepared = prepare_embedding_tables(tables, D)
    fwd = jax.jit(lambda i, l: sequence_sparse_arch_forward(prepared, i, l))
    out = jax.block_until_ready(fwd(ids_padded, lengths))

    # Plain-JAX reference of the torch forward (lookup + jagged_2d_to_dense + cat).
    ref_blocks = []
    for f in range(F):
        emb = jnp.take(tables[f], ids_padded[f], axis=0)    # (B, MAX_SEQ, D)
        mask = jnp.arange(MAX_SEQ)[None, :, None] < lengths[f][:, None, None]
        ref_blocks.append(jnp.where(mask, emb, 0.0).reshape(B, MAX_SEQ * D))
    ref = jnp.concatenate(ref_blocks, axis=1)

    assert out.shape == (B, F * MAX_SEQ * D)
    assert jnp.allclose(out, ref, atol=1e-5), "Pallas kernel mismatch vs reference"
    print("KERNEL_OK")
</pallas_src>

<mosaic_0001>
module attributes {stable_mosaic.version = 11 : i64} {
  func.func @_seq_embedding_gather_kernel(%arg0: i32, %arg1: memref<1x40x4xi32, #tpu.memory_space<vmem>>, %arg2: memref<3x1024x128xbf16, #tpu.memory_space<vmem>>, %arg3: memref<40x128xf32, #tpu.memory_space<vmem>>) attributes {dimension_semantics = [#tpu.dimension_semantics<parallel>], iteration_bounds = array<i64: 1>, scalar_prefetch = 0 : i64, scratch_operands = 0 : i64, tpu.core_type = #tpu.core_type<tc>, window_params = [{transform_indices = @transform_0, window_bounds = array<i64: 1, 40, 4>}, {pipeline_mode = #tpu.pipeline_mode<synchronous>, transform_indices = @transform_1, window_bounds = array<i64: 3, 1024, 128>}, {transform_indices = @transform_2, window_bounds = array<i64: 40, 128>}]} {
    %c0 = arith.constant 0 : index
    %c0_0 = arith.constant 0 : index
    %c0_1 = arith.constant 0 : index
    %0 = vector.load %arg1[%c0, %c0_0, %c0_1] : memref<1x40x4xi32, #tpu.memory_space<vmem>>, vector<1x40x4xi32>
    %1 = vector.shape_cast %0 : vector<1x40x4xi32> to vector<40x4xi32>
    %2 = tpu.iota {dimensions = array<i32: 1>} : vector<40x256xi32>
    %3 = vector.extract_strided_slice %1 {offsets = [0, 0], sizes = [40, 1], strides = [1, 1]} : vector<40x4xi32> to vector<40x1xi32>
    %4 = vector.broadcast %3 : vector<40x1xi32> to vector<40x256xi32>
    %5 = arith.cmpi eq, %2, %4 : vector<40x256xi32>
    %6 = arith.extui %5 : vector<40x256xi1> to vector<40x256xi32>
    %7 = arith.sitofp %6 : vector<40x256xi32> to vector<40x256xf32>
    %8 = arith.truncf %7 : vector<40x256xf32> to vector<40x256xbf16>
    %9 = vector.extract_strided_slice %1 {offsets = [0, 1], sizes = [40, 1], strides = [1, 1]} : vector<40x4xi32> to vector<40x1xi32>
    %10 = vector.broadcast %9 : vector<40x1xi32> to vector<40x256xi32>
    %11 = arith.cmpi eq, %2, %10 : vector<40x256xi32>
    %12 = arith.extui %11 : vector<40x256xi1> to vector<40x256xi32>
    %13 = arith.sitofp %12 : vector<40x256xi32> to vector<40x256xf32>
    %14 = arith.truncf %13 : vector<40x256xf32> to vector<40x256xbf16>
    %15 = vector.extract_strided_slice %1 {offsets = [0, 2], sizes = [40, 1], strides = [1, 1]} : vector<40x4xi32> to vector<40x1xi32>
    %16 = vector.broadcast %15 : vector<40x1xi32> to vector<40x256xi32>
    %17 = arith.cmpi eq, %2, %16 : vector<40x256xi32>
    %18 = arith.extui %17 : vector<40x256xi1> to vector<40x256xi32>
    %19 = arith.sitofp %18 : vector<40x256xi32> to vector<40x256xf32>
    %20 = arith.truncf %19 : vector<40x256xf32> to vector<40x256xbf16>
    %21 = vector.extract_strided_slice %1 {offsets = [0, 3], sizes = [40, 1], strides = [1, 1]} : vector<40x4xi32> to vector<40x1xi32>
    %22 = vector.broadcast %21 : vector<40x1xi32> to vector<40x256xi32>
    %23 = arith.cmpi eq, %2, %22 : vector<40x256xi32>
    %24 = arith.extui %23 : vector<40x256xi1> to vector<40x256xi32>
    %25 = arith.sitofp %24 : vector<40x256xi32> to vector<40x256xf32>
    %26 = arith.truncf %25 : vector<40x256xf32> to vector<40x256xbf16>
    %27 = tpu.concatenate %8, %14, %20, %26 in 1 : vector<40x256xbf16>, vector<40x256xbf16>, vector<40x256xbf16>, vector<40x256xbf16> -> vector<40x1024xbf16>
    %c0_2 = arith.constant 0 : index
    %c0_3 = arith.constant 0 : index
    %c0_4 = arith.constant 0 : index
    %28 = vector.load %arg2[%c0_2, %c0_3, %c0_4] : memref<3x1024x128xbf16, #tpu.memory_space<vmem>>, vector<1x1024x128xbf16>
    %29 = vector.shape_cast %28 : vector<1x1024x128xbf16> to vector<1024x128xbf16>
    %cst = arith.constant dense<0.000000e+00> : vector<40x128xf32>
    %30 = tpu.matmul %27, %29, %cst {dimension_numbers = #tpu.dot_dimension_numbers<[1], [0], [0], [1], [0, 0, 1, 1], [], []>} : vector<40x1024xbf16>, vector<1024x128xbf16>, vector<40x128xf32> -> vector<40x128xf32>
    %c1 = arith.constant 1 : index
    %c0_5 = arith.constant 0 : index
    %c0_6 = arith.constant 0 : index
    %31 = vector.load %arg2[%c1, %c0_5, %c0_6] : memref<3x1024x128xbf16, #tpu.memory_space<vmem>>, vector<1x1024x128xbf16>
    %32 = vector.shape_cast %31 : vector<1x1024x128xbf16> to vector<1024x128xbf16>
    %cst_7 = arith.constant dense<0.000000e+00> : vector<40x128xf32>
    %33 = tpu.matmul %27, %32, %cst_7 {dimension_numbers = #tpu.dot_dimension_numbers<[1], [0], [0], [1], [0, 0, 1, 1], [], []>} : vector<40x1024xbf16>, vector<1024x128xbf16>, vector<40x128xf32> -> vector<40x128xf32>
    %34 = arith.addf %30, %33 : vector<40x128xf32>
    %c2 = arith.constant 2 : index
    %c0_8 = arith.constant 0 : index
    %c0_9 = arith.constant 0 : index
    %35 = vector.load %arg2[%c2, %c0_8, %c0_9] : memref<3x1024x128xbf16, #tpu.memory_space<vmem>>, vector<1x1024x128xbf16>
    %36 = vector.shape_cast %35 : vector<1x1024x128xbf16> to vector<1024x128xbf16>
    %cst_10 = arith.constant dense<0.000000e+00> : vector<40x128xf32>
    %37 = tpu.matmul %27, %36, %cst_10 {dimension_numbers = #tpu.dot_dimension_numbers<[1], [0], [0], [1], [0, 0, 1, 1], [], []>} : vector<40x1024xbf16>, vector<1024x128xbf16>, vector<40x128xf32> -> vector<40x128xf32>
    %38 = arith.addf %34, %37 : vector<40x128xf32>
    %c0_11 = arith.constant 0 : index
    %c0_12 = arith.constant 0 : index
    %39 = vector.load %arg3[%c0_11, %c0_12] : memref<40x128xf32, #tpu.memory_space<vmem>>, vector<40x128xf32>
    tpu.vector_store %arg3[%c0_11, %c0_12], %38 {strides = array<i32>} : memref<40x128xf32, #tpu.memory_space<vmem>>, vector<40x128xf32>,
    return
  }
  func.func @transform_0(%arg0: i32) -> (i32, i32, i32) {
    %c0_i32 = arith.constant 0 : i32
    %c0_i32_0 = arith.constant 0 : i32
    %c0_i32_1 = arith.constant 0 : i32
    return %arg0, %c0_i32, %c0_i32_0 : i32, i32, i32
  }
  func.func @transform_1(%arg0: i32) -> (i32, i32, i32) {
    %c0_i32 = arith.constant 0 : i32
    %c0_i32_0 = arith.constant 0 : i32
    %c0_i32_1 = arith.constant 0 : i32
    %c0_i32_2 = arith.constant 0 : i32
    return %c0_i32, %c0_i32_0, %c0_i32_1 : i32, i32, i32
  }
  func.func @transform_2(%arg0: i32) -> (i32, i32) {
    %c0_i32 = arith.constant 0 : i32
    %c0_i32_0 = arith.constant 0 : i32
    return %arg0, %c0_i32 : i32, i32
  }
}

</mosaic_0001>

<llo_original>
// kernel: _lambda_.1
$region0: #{_lambda_.1}
  #allocation0 [shape = 'u32[]', space=smem, size = 0x4, offset = 0x4, fixed_abs, tag = 'smem constant byte address 0x4 - core index']
  #allocation1 [shape = 'u32[144,128]{1,0:T(1,128)}', space=vmem, size = 0x12000, scoped, tag = 'internal scratch']
  %s0 = inlined_call_operand.vmem [shape: s32[1,40,4], index: 0, kind: input, shape index: {}]
  %s1 = inlined_call_operand.hbm [shape: bf16[3,1024,128], index: 1, kind: input, shape index: {}]
  %s2 = inlined_call_operand.vmem [shape: f32[40,128], index: 2, kind: output, shape index: {}]
  %s3 = sld [smem:[#allocation0]]
  $region22: #{_lambda_.1} parent=0
    _
  %s5 = ssub.s32 1, %s3
  %s6 = scalar_select 0, %s5, %s3
  $region1: #{_lambda_.1} parent=0
    #allocation2 [shape = 'u8[786432]{0}', space=vmem, size = 0xc0000, scoped, tag = 'input window, operand 1, single buffered']
    #allocation3 [shape = 's32[1]{0}', space=sflag, size = 0x4, scoped, tag = 'scoped memory for _lambda_.1']
    %7 = vsyncpa [#allocation3], 0
    // Predicated region
    $region2: #{_lambda_.1} parent=1 // pred_check
      _
    $region3: #{_lambda_.1} parent=1 // pred_check_branch
      %9 = sbr.rel (0) target = $region5
    $region4: #{_lambda_.1} parent=1 // pred_region
      _
    $region5: #{_lambda_.1} parent=1 // pred_fallthru
      _
    // Predicated region
    $region6: #{_lambda_.1} parent=1 // pred_check
      _
    $region7: #{_lambda_.1} parent=1 // pred_check_branch
      %11 = sbr.rel (0) target = $region9
    $region8: #{_lambda_.1} parent=1 // pred_region
      %s13 = ssub.s32 24576, 24576
      %14 = vsyncadd [#allocation3], %s13
      %s15 = sshll.u32 [#allocation2], 4
      %s16 = int_to_ptr.vmem [resolvable:$true] %s15
      %21 = dma.hbm_to_vmem [thread:$0]  %s1, 24576, %s16, [#allocation3], 64, 64, 4
    $region9: #{_lambda_.1} parent=1 // pred_fallthru
      _
    // Predicated region
    $region10: #{_lambda_.1} parent=1 // pred_check
      _
    $region11: #{_lambda_.1} parent=1 // pred_check_branch
      %23 = sbr.rel (0) target = $region13
    $region12: #{_lambda_.1} parent=1 // pred_region
      %24 = dma.done [#allocation3], 24576
    $region13: #{_lambda_.1} parent=1 // pred_fallthru
      _
    %v26 = vld [vmem:[%s0] sm:$0xff]
    %v27 = vld [vmem:[%s0 + $0x8] sm:$0xff]
    %v28 = vld [vmem:[%s0 + $0x10] sm:$0xff]
    %v29 = vld [vmem:[%s0 + $0x18] sm:$0xff]
    %v30 = vld [vmem:[%s0 + $0x20] sm:$0xff]
    %v31 = vlaneseq
    %v32 = vand.u32 %v31, 127
    %v33 = vadd.s32 %v32, 128
    %34 = vset.pattern.permute.xlu0 0
    %35 = vperm.xlu0 %34, %v26
    %v36 = vpop.permute.xlu0 %35
    %37 = vset.pattern.permute.xlu0 0
    %38 = vperm.xlu0 %37, %v27
    %v39 = vpop.permute.xlu0 %38
    %40 = vset.pattern.permute.xlu0 0
    %41 = vperm.xlu0 %40, %v28
    %v42 = vpop.permute.xlu0 %41
    %43 = vset.pattern.permute.xlu0 0
    %44 = vperm.xlu0 %43, %v29
    %v45 = vpop.permute.xlu0 %44
    %46 = vset.pattern.permute.xlu0 0
    %47 = vperm.xlu0 %46, %v30
    %v48 = vpop.permute.xlu0 %47
    %vm49 = vcmp.eq.s32.totalorder %v32, %v36
    %vm50 = vcmp.eq.s32.totalorder %v33, %v36
    %vm51 = vcmp.eq.s32.totalorder %v32, %v39
    %vm52 = vcmp.eq.s32.totalorder %v33, %v39
    %vm53 = vcmp.eq.s32.totalorder %v32, %v42
    %vm54 = vcmp.eq.s32.totalorder %v33, %v42
    %vm55 = vcmp.eq.s32.totalorder %v32, %v45
    %vm56 = vcmp.eq.s32.totalorder %v33, %v45
    %vm57 = vcmp.eq.s32.totalorder %v32, %v48
    %vm58 = vcmp.eq.s32.totalorder %v33, %v48
    %v59 = vsel %vm49, 1, 0
    %v60 = vsel %vm50, 1, 0
    %v61 = vsel %vm51, 1, 0
    %v62 = vsel %vm52, 1, 0
    %v63 = vsel %vm53, 1, 0
    %v64 = vsel %vm54, 1, 0
    %v65 = vsel %vm55, 1, 0
    %v66 = vsel %vm56, 1, 0
    %v67 = vsel %vm57, 1, 0
    %v68 = vsel %vm58, 1, 0
    %v69 = vcvt.s32.f32 %v59
    %v70 = vcvt.s32.f32 %v60
    %v71 = vcvt.s32.f32 %v61
    %v72 = vcvt.s32.f32 %v62
    %v73 = vcvt.s32.f32 %v63
    %v74 = vcvt.s32.f32 %v64
    %v75 = vcvt.s32.f32 %v65
    %v76 = vcvt.s32.f32 %v66
    %v77 = vcvt.s32.f32 %v67
    %v78 = vcvt.s32.f32 %v68
    %v79 = vpack.c.bf16 %v71, %v69
    %v80 = vpack.c.bf16 %v72, %v70
    %v81 = vpack.c.bf16 %v75, %v73
    %v82 = vpack.c.bf16 %v76, %v74
    %v83 = vpack.c.bf16 %v77, %v77
    %v84 = vpack.c.bf16 %v78, %v78
    %85 = vset.pattern.permute.xlu0 1
    %86 = vperm.xlu0 %85, %v26
    %v87 = vpop.permute.xlu0 %86
    %88 = vset.pattern.permute.xlu0 1
    %89 = vperm.xlu0 %88, %v27
    %v90 = vpop.permute.xlu0 %89
    %91 = vset.pattern.permute.xlu0 1
    %92 = vperm.xlu0 %91, %v28
    %v93 = vpop.permute.xlu0 %92
    %94 = vset.pattern.permute.xlu0 1
    %95 = vperm.xlu0 %94, %v29
    %v96 = vpop.permute.xlu0 %95
    %97 = vset.pattern.permute.xlu0 1
    %98 = vperm.xlu0 %97, %v30
    %v99 = vpop.permute.xlu0 %98
    %vm100 = vcmp.eq.s32.totalorder %v32, %v87
    %vm101 = vcmp.eq.s32.totalorder %v33, %v87
    %vm102 = vcmp.eq.s32.totalorder %v32, %v90
    %vm103 = vcmp.eq.s32.totalorder %v33, %v90
    %vm104 = vcmp.eq.s32.totalorder %v32, %v93
    %vm105 = vcmp.eq.s32.totalorder %v33, %v93
    %vm106 = vcmp.eq.s32.totalorder %v32, %v96
    %vm107 = vcmp.eq.s32.totalorder %v33, %v96
    %vm108 = vcmp.eq.s32.totalorder %v32, %v99
    %vm109 = vcmp.eq.s32.totalorder %v33, %v99
    %v110 = vsel %vm100, 1, 0
    %v111 = vsel %vm101, 1, 0
    %v112 = vsel %vm102, 1, 0
    %v113 = vsel %vm103, 1, 0
    %v114 = vsel %vm104, 1, 0
    %v115 = vsel %vm105, 1, 0
    %v116 = vsel %vm106, 1, 0
    %v117 = vsel %vm107, 1, 0
    %v118 = vsel %vm108, 1, 0
    %v119 = vsel %vm109, 1, 0
    %v120 = vcvt.s32.f32 %v110
    %v121 = vcvt.s32.f32 %v111
    %v122 = vcvt.s32.f32 %v112
    %v123 = vcvt.s32.f32 %v113
    %v124 = vcvt.s32.f32 %v114
    %v125 = vcvt.s32.f32 %v115
    %v126 = vcvt.s32.f32 %v116
    %v127 = vcvt.s32.f32 %v117
    %v128 = vcvt.s32.f32 %v118
    %v129 = vcvt.s32.f32 %v119
    %v130 = vpack.c.bf16 %v122, %v120
    %v131 = vpack.c.bf16 %v123, %v121
    %v132 = vpack.c.bf16 %v126, %v124
    %v133 = vpack.c.bf16 %v127, %v125
    %v134 = vpack.c.bf16 %v128, %v128
    %v135 = vpack.c.bf16 %v129, %v129
    %136 = vset.pattern.permute.xlu0 2
    %137 = vperm.xlu0 %136, %v26
    %v138 = vpop.permute.xlu0 %137
    %139 = vset.pattern.permute.xlu0 2
    %140 = vperm.xlu0 %139, %v27
    %v141 = vpop.permute.xlu0 %140
    %142 = vset.pattern.permute.xlu0 2
    %143 = vperm.xlu0 %142, %v28
    %v144 = vpop.permute.xlu0 %143
    %145 = vset.pattern.permute.xlu0 2
    %146 = vperm.xlu0 %145, %v29
    %v147 = vpop.permute.xlu0 %146
    %148 = vset.pattern.permute.xlu0 2
    %149 = vperm.xlu0 %148, %v30
    %v150 = vpop.permute.xlu0 %149
    %vm151 = vcmp.eq.s32.totalorder %v32, %v138
    %vm152 = vcmp.eq.s32.totalorder %v33, %v138
    %vm153 = vcmp.eq.s32.totalorder %v32, %v141
    %vm154 = vcmp.eq.s32.totalorder %v33, %v141
    %vm155 = vcmp.eq.s32.totalorder %v32, %v144
    %vm156 = vcmp.eq.s32.totalorder %v33, %v144
    %vm157 = vcmp.eq.s32.totalorder %v32, %v147
    %vm158 = vcmp.eq.s32.totalorder %v33, %v147
    %vm159 = vcmp.eq.s32.totalorder %v32, %v150
    %vm160 = vcmp.eq.s32.totalorder %v33, %v150
    %v161 = vsel %vm151, 1, 0
    %v162 = vsel %vm152, 1, 0
    %v163 = vsel %vm153, 1, 0
    %v164 = vsel %vm154, 1, 0
    %v165 = vsel %vm155, 1, 0
    %v166 = vsel %vm156, 1, 0
    %v167 = vsel %vm157, 1, 0
    %v168 = vsel %vm158, 1, 0
    %v169 = vsel %vm159, 1, 0
    %v170 = vsel %vm160, 1, 0
    %v171 = vcvt.s32.f32 %v161
    %v172 = vcvt.s32.f32 %v162
    %v173 = vcvt.s32.f32 %v163
    %v174 = vcvt.s32.f32 %v164
    %v175 = vcvt.s32.f32 %v165
    %v176 = vcvt.s32.f32 %v166
    %v177 = vcvt.s32.f32 %v167
    %v178 = vcvt.s32.f32 %v168
    %v179 = vcvt.s32.f32 %v169
    %v180 = vcvt.s32.f32 %v170
    %v181 = vpack.c.bf16 %v173, %v171
    %v182 = vpack.c.bf16 %v174, %v172
    %v183 = vpack.c.bf16 %v177, %v175
    %v184 = vpack.c.bf16 %v178, %v176
    %v185 = vpack.c.bf16 %v179, %v179
    %v186 = vpack.c.bf16 %v180, %v180
    %187 = vset.pattern.permute.xlu0 3
    %188 = vperm.xlu0 %187, %v26
    %v189 = vpop.permute.xlu0 %188
    %190 = vset.pattern.permute.xlu0 3
    %191 = vperm.xlu0 %190, %v27
    %v192 = vpop.permute.xlu0 %191
    %193 = vset.pattern.permute.xlu0 3
    %194 = vperm.xlu0 %193, %v28
    %v195 = vpop.permute.xlu0 %194
    %196 = vset.pattern.permute.xlu0 3
    %197 = vperm.xlu0 %196, %v29
    %v198 = vpop.permute.xlu0 %197
    %199 = vset.pattern.permute.xlu0 3
    %200 = vperm.xlu0 %199, %v30
    %v201 = vpop.permute.xlu0 %200
    %vm202 = vcmp.eq.s32.totalorder %v32, %v189
    %vm203 = vcmp.eq.s32.totalorder %v33, %v189
    %vm204 = vcmp.eq.s32.totalorder %v32, %v192
    %vm205 = vcmp.eq.s32.totalorder %v33, %v192
    %vm206 = vcmp.eq.s32.totalorder %v32, %v195
    %vm207 = vcmp.eq.s32.totalorder %v33, %v195
    %vm208 = vcmp.eq.s32.totalorder %v32, %v198
    %vm209 = vcmp.eq.s32.totalorder %v33, %v198
    %vm210 = vcmp.eq.s32.totalorder %v32, %v201
    %vm211 = vcmp.eq.s32.totalorder %v33, %v201
    %v212 = vsel %vm202, 1, 0
    %v213 = vsel %vm203, 1, 0
    %v214 = vsel %vm204, 1, 0
    %v215 = vsel %vm205, 1, 0
    %v216 = vsel %vm206, 1, 0
    %v217 = vsel %vm207, 1, 0
    %v218 = vsel %vm208, 1, 0
    %v219 = vsel %vm209, 1, 0
    %v220 = vsel %vm210, 1, 0
    %v221 = vsel %vm211, 1, 0
    %v222 = vcvt.s32.f32 %v212
    %v223 = vcvt.s32.f32 %v213
    %v224 = vcvt.s32.f32 %v214
    %v225 = vcvt.s32.f32 %v215
    %v226 = vcvt.s32.f32 %v216
    %v227 = vcvt.s32.f32 %v217
    %v228 = vcvt.s32.f32 %v218
    %v229 = vcvt.s32.f32 %v219
    %v230 = vcvt.s32.f32 %v220
    %v231 = vcvt.s32.f32 %v221
    %v232 = vpack.c.bf16 %v224, %v222
    %v233 = vpack.c.bf16 %v225, %v223
    %v234 = vpack.c.bf16 %v228, %v226
    %v235 = vpack.c.bf16 %v229, %v227
    %v236 = vpack.c.bf16 %v230, %v230
    %v237 = vpack.c.bf16 %v231, %v231
    %v238 = vld [vmem:[#allocation2] sm:$0xf]
    %v239 = vld [vmem:[#allocation2 + $0x4] sm:$0xf]
    %v240 = vld [vmem:[#allocation2 + $0x8] sm:$0xf]
    %v241 = vld [vmem:[#allocation2 + $0xc] sm:$0xf]
    %v242 = vld [vmem:[#allocation2 + $0x10] sm:$0xf]
    %v243 = vld [vmem:[#allocation2 + $0x14] sm:$0xf]
    %v244 = vld [vmem:[#allocation2 + $0x18] sm:$0xf]
    %v245 = vld [vmem:[#allocation2 + $0x1c] sm:$0xf]
    %v246 = vld [vmem:[#allocation2 + $0x20] sm:$0xf]
    %v247 = vld [vmem:[#allocation2 + $0x24] sm:$0xf]
    %v248 = vld [vmem:[#allocation2 + $0x28] sm:$0xf]
    %v249 = vld [vmem:[#allocation2 + $0x2c] sm:$0xf]
    %v250 = vld [vmem:[#allocation2 + $0x30] sm:$0xf]
    %v251 = vld [vmem:[#allocation2 + $0x34] sm:$0xf]
    %v252 = vld [vmem:[#allocation2 + $0x38] sm:$0xf]
    %v253 = vld [vmem:[#allocation2 + $0x3c] sm:$0xf]
    %v254 = vld [vmem:[#allocation2 + $0x40] sm:$0xf]
    %v255 = vld [vmem:[#allocation2 + $0x44] sm:$0xf]
    %v256 = vld [vmem:[#allocation2 + $0x48] sm:$0xf]
    %v257 = vld [vmem:[#allocation2 + $0x4c] sm:$0xf]
    %v258 = vld [vmem:[#allocation2 + $0x50] sm:$0xf]
    %v259 = vld [vmem:[#allocation2 + $0x54] sm:$0xf]
    %v260 = vld [vmem:[#allocation2 + $0x58] sm:$0xf]
    %v261 = vld [vmem:[#allocation2 + $0x5c] sm:$0xf]
    %v262 = vld [vmem:[#allocation2 + $0x60] sm:$0xf]
    %v263 = vld [vmem:[#allocation2 + $0x64] sm:$0xf]
    %v264 = vld [vmem:[#allocation2 + $0x68] sm:$0xf]
    %v265 = vld [vmem:[#allocation2 + $0x6c] sm:$0xf]
    %v266 = vld [vmem:[#allocation2 + $0x70] sm:$0xf]
    %v267 = vld [vmem:[#allocation2 + $0x74] sm:$0xf]
    %v268 = vld [vmem:[#allocation2 + $0x78] sm:$0xf]
    %v269 = vld [vmem:[#allocation2 + $0x7c] sm:$0xf]
    %v270 = vld [vmem:[#allocation2 + $0x80] sm:$0xf]
    %v271 = vld [vmem:[#allocation2 + $0x84] sm:$0xf]
    %v272 = vld [vmem:[#allocation2 + $0x88] sm:$0xf]
    %v273 = vld [vmem:[#allocation2 + $0x8c] sm:$0xf]
    %v274 = vld [vmem:[#allocation2 + $0x90] sm:$0xf]
    %v275 = vld [vmem:[#allocation2 + $0x94] sm:$0xf]
    %v276 = vld [vmem:[#allocation2 + $0x98] sm:$0xf]
    %v277 = vld [vmem:[#allocation2 + $0x9c] sm:$0xf]
    %v278 = vld [vmem:[#allocation2 + $0xa0] sm:$0xf]
    %v279 = vld [vmem:[#allocation2 + $0xa4] sm:$0xf]
    %v280 = vld [vmem:[#allocation2 + $0xa8] sm:$0xf]
    %v281 = vld [vmem:[#allocation2 + $0xac] sm:$0xf]
    %v282 = vld [vmem:[#allocation2 + $0xb0] sm:$0xf]
    %v283 = vld [vmem:[#allocation2 + $0xb4] sm:$0xf]
    %v284 = vld [vmem:[#allocation2 + $0xb8] sm:$0xf]
    %v285 = vld [vmem:[#allocation2 + $0xbc] sm:$0xf]
    %v286 = vld [vmem:[#allocation2 + $0xc0] sm:$0xf]
    %v287 = vld [vmem:[#allocation2 + $0xc4] sm:$0xf]
    %v288 = vld [vmem:[#allocation2 + $0xc8] sm:$0xf]
    %v289 = vld [vmem:[#allocation2 + $0xcc] sm:$0xf]
    %v290 = vld [vmem:[#allocation2 + $0xd0] sm:$0xf]
    %v291 = vld [vmem:[#allocation2 + $0xd4] sm:$0xf]
    %v292 = vld [vmem:[#allocation2 + $0xd8] sm:$0xf]
    %v293 = vld [vmem:[#allocation2 + $0xdc] sm:$0xf]
    %v294 = vld [vmem:[#allocation2 + $0xe0] sm:$0xf]
    %v295 = vld [vmem:[#allocation2 + $0xe4] sm:$0xf]
    %v296 = vld [vmem:[#allocation2 + $0xe8] sm:$0xf]
    %v297 = vld [vmem:[#allocation2 + $0xec] sm:$0xf]
    %v298 = vld [vmem:[#allocation2 + $0xf0] sm:$0xf]
    %v299 = vld [vmem:[#allocation2 + $0xf4] sm:$0xf]
    %v300 = vld [vmem:[#allocation2 + $0xf8] sm:$0xf]
    %v301 = vld [vmem:[#allocation2 + $0xfc] sm:$0xf]
    %v302 = vld [vmem:[#allocation2 + $0x100] sm:$0xf]
    %v303 = vld [vmem:[#allocation2 + $0x104] sm:$0xf]
    %v304 = vld [vmem:[#allocation2 + $0x108] sm:$0xf]
    %v305 = vld [vmem:[#allocation2 + $0x10c] sm:$0xf]
    %v306 = vld [vmem:[#allocation2 + $0x110] sm:$0xf]
    %v307 = vld [vmem:[#allocation2 + $0x114] sm:$0xf]
    %v308 = vld [vmem:[#allocation2 + $0x118] sm:$0xf]
    %v309 = vld [vmem:[#allocation2 + $0x11c] sm:$0xf]
    %v310 = vld [vmem:[#allocation2 + $0x120] sm:$0xf]
    %v311 = vld [vmem:[#allocation2 + $0x124] sm:$0xf]
    %v312 = vld [vmem:[#allocation2 + $0x128] sm:$0xf]
    %v313 = vld [vmem:[#allocation2 + $0x12c] sm:$0xf]
    %v314 = vld [vmem:[#allocation2 + $0x130] sm:$0xf]
    %v315 = vld [vmem:[#allocation2 + $0x134] sm:$0xf]
    %v316 = vld [vmem:[#allocation2 + $0x138] sm:$0xf]
    %v317 = vld [vmem:[#allocation2 + $0x13c] sm:$0xf]
    %v318 = vld [vmem:[#allocation2 + $0x140] sm:$0xf]
    %v319 = vld [vmem:[#allocation2 + $0x144] sm:$0xf]
    %v320 = vld [vmem:[#allocation2 + $0x148] sm:$0xf]
    %v321 = vld [vmem:[#allocation2 + $0x14c] sm:$0xf]
    %v322 = vld [vmem:[#allocation2 + $0x150] sm:$0xf]
    %v323 = vld [vmem:[#allocation2 + $0x154] sm:$0xf]
    %v324 = vld [vmem:[#allocation2 + $0x158] sm:$0xf]
    %v325 = vld [vmem:[#allocation2 + $0x15c] sm:$0xf]
    %v326 = vld [vmem:[#allocation2 + $0x160] sm:$0xf]
    %v327 = vld [vmem:[#allocation2 + $0x164] sm:$0xf]
    %v328 = vld [vmem:[#allocation2 + $0x168] sm:$0xf]
    %v329 = vld [vmem:[#allocation2 + $0x16c] sm:$0xf]
    %v330 = vld [vmem:[#allocation2 + $0x170] sm:$0xf]
    %v331 = vld [vmem:[#allocation2 + $0x174] sm:$0xf]
    %v332 = vld [vmem:[#allocation2 + $0x178] sm:$0xf]
    %v333 = vld [vmem:[#allocation2 + $0x17c] sm:$0xf]
    %v334 = vld [vmem:[#allocation2 + $0x180] sm:$0xf]
    %v335 = vld [vmem:[#allocation2 + $0x184] sm:$0xf]
    %v336 = vld [vmem:[#allocation2 + $0x188] sm:$0xf]
    %v337 = vld [vmem:[#allocation2 + $0x18c] sm:$0xf]
    %v338 = vld [vmem:[#allocation2 + $0x190] sm:$0xf]
    %v339 = vld [vmem:[#allocation2 + $0x194] sm:$0xf]
    %v340 = vld [vmem:[#allocation2 + $0x198] sm:$0xf]
    %v341 = vld [vmem:[#allocation2 + $0x19c] sm:$0xf]
    %v342 = vld [vmem:[#allocation2 + $0x1a0] sm:$0xf]
    %v343 = vld [vmem:[#allocation2 + $0x1a4] sm:$0xf]
    %v344 = vld [vmem:[#allocation2 + $0x1a8] sm:$0xf]
    %v345 = vld [vmem:[#allocation2 + $0x1ac] sm:$0xf]
    %v346 = vld [vmem:[#allocation2 + $0x1b0] sm:$0xf]
    %v347 = vld [vmem:[#allocation2 + $0x1b4] sm:$0xf]
    %v348 = vld [vmem:[#allocation2 + $0x1b8] sm:$0xf]
    %v349 = vld [vmem:[#allocation2 + $0x1bc] sm:$0xf]
    %v350 = vld [vmem:[#allocation2 + $0x1c0] sm:$0xf]
    %v351 = vld [vmem:[#allocation2 + $0x1c4] sm:$0xf]
    %v352 = vld [vmem:[#allocation2 + $0x1c8] sm:$0xf]
    %v353 = vld [vmem:[#allocation2 + $0x1cc] sm:$0xf]
    %v354 = vld [vmem:[#allocation2 + $0x1d0] sm:$0xf]
    %v355 = vld [vmem:[#allocation2 + $0x1d4] sm:$0xf]
    %v356 = vld [vmem:[#allocation2 + $0x1d8] sm:$0xf]
    %v357 = vld [vmem:[#allocation2 + $0x1dc] sm:$0xf]
    %v358 = vld [vmem:[#allocation2 + $0x1e0] sm:$0xf]
    %v359 = vld [vmem:[#allocation2 + $0x1e4] sm:$0xf]
    %v360 = vld [vmem:[#allocation2 + $0x1e8] sm:$0xf]
    %v361 = vld [vmem:[#allocation2 + $0x1ec] sm:$0xf]
    %v362 = vld [vmem:[#allocation2 + $0x1f0] sm:$0xf]
    %v363 = vld [vmem:[#allocation2 + $0x1f4] sm:$0xf]
    %v364 = vld [vmem:[#allocation2 + $0x1f8] sm:$0xf]
    %v365 = vld [vmem:[#allocation2 + $0x1fc] sm:$0xf]
    %s366 = scalar_lea.vmem [#allocation2], 512
    %v367 = vld [vmem:[%s366] sm:$0xf]
    %v368 = vld [vmem:[%s366 + $0x4] sm:$0xf]
    %v369 = vld [vmem:[%s366 + $0x8] sm:$0xf]
    %v370 = vld [vmem:[%s366 + $0xc] sm:$0xf]
    %v371 = vld [vmem:[%s366 + $0x10] sm:$0xf]
    %v372 = vld [vmem:[%s366 + $0x14] sm:$0xf]
    %v373 = vld [vmem:[%s366 + $0x18] sm:$0xf]
    %v374 = vld [vmem:[%s366 + $0x1c] sm:$0xf]
    %v375 = vld [vmem:[%s366 + $0x20] sm:$0xf]
    %v376 = vld [vmem:[%s366 + $0x24] sm:$0xf]
    %v377 = vld [vmem:[%s366 + $0x28] sm:$0xf]
    %v378 = vld [vmem:[%s366 + $0x2c] sm:$0xf]
    %v379 = vld [vmem:[%s366 + $0x30] sm:$0xf]
    %v380 = vld [vmem:[%s366 + $0x34] sm:$0xf]
    %v381 = vld [vmem:[%s366 + $0x38] sm:$0xf]
    %v382 = vld [vmem:[%s366 + $0x3c] sm:$0xf]
    %v383 = vld [vmem:[%s366 + $0x40] sm:$0xf]
    %v384 = vld [vmem:[%s366 + $0x44] sm:$0xf]
    %v385 = vld [vmem:[%s366 + $0x48] sm:$0xf]
    %v386 = vld [vmem:[%s366 + $0x4c] sm:$0xf]
    %v387 = vld [vmem:[%s366 + $0x50] sm:$0xf]
    %v388 = vld [vmem:[%s366 + $0x54] sm:$0xf]
    %v389 = vld [vmem:[%s366 + $0x58] sm:$0xf]
    %v390 = vld [vmem:[%s366 + $0x5c] sm:$0xf]
    %v391 = vld [vmem:[%s366 + $0x60] sm:$0xf]
    %v392 = vld [vmem:[%s366 + $0x64] sm:$0xf]
    %v393 = vld [vmem:[%s366 + $0x68] sm:$0xf]
    %v394 = vld [vmem:[%s366 + $0x6c] sm:$0xf]
    %v395 = vld [vmem:[%s366 + $0x70] sm:$0xf]
    %v396 = vld [vmem:[%s366 + $0x74] sm:$0xf]
    %v397 = vld [vmem:[%s366 + $0x78] sm:$0xf]
    %v398 = vld [vmem:[%s366 + $0x7c] sm:$0xf]
    %v399 = vld [vmem:[%s366 + $0x80] sm:$0xf]
    %v400 = vld [vmem:[%s366 + $0x84] sm:$0xf]
    %v401 = vld [vmem:[%s366 + $0x88] sm:$0xf]
    %v402 = vld [vmem:[%s366 + $0x8c] sm:$0xf]
    %v403 = vld [vmem:[%s366 + $0x90] sm:$0xf]
    %v404 = vld [vmem:[%s366 + $0x94] sm:$0xf]
    %v405 = vld [vmem:[%s366 + $0x98] sm:$0xf]
    %v406 = vld [vmem:[%s366 + $0x9c] sm:$0xf]
    %v407 = vld [vmem:[%s366 + $0xa0] sm:$0xf]
    %v408 = vld [vmem:[%s366 + $0xa4] sm:$0xf]
    %v409 = vld [vmem:[%s366 + $0xa8] sm:$0xf]
    %v410 = vld [vmem:[%s366 + $0xac] sm:$0xf]
    %v411 = vld [vmem:[%s366 + $0xb0] sm:$0xf]
    %v412 = vld [vmem:[%s366 + $0xb4] sm:$0xf]
    %v413 = vld [vmem:[%s366 + $0xb8] sm:$0xf]
    %v414 = vld [vmem:[%s366 + $0xbc] sm:$0xf]
    %v415 = vld [vmem:[%s366 + $0xc0] sm:$0xf]
    %v416 = vld [vmem:[%s366 + $0xc4] sm:$0xf]
    %v417 = vld [vmem:[%s366 + $0xc8] sm:$0xf]
    %v418 = vld [vmem:[%s366 + $0xcc] sm:$0xf]
    %v419 = vld [vmem:[%s366 + $0xd0] sm:$0xf]
    %v420 = vld [vmem:[%s366 + $0xd4] sm:$0xf]
    %v421 = vld [vmem:[%s366 + $0xd8] sm:$0xf]
    %v422 = vld [vmem:[%s366 + $0xdc] sm:$0xf]
    %v423 = vld [vmem:[%s366 + $0xe0] sm:$0xf]
    %v424 = vld [vmem:[%s366 + $0xe4] sm:$0xf]
    %v425 = vld [vmem:[%s366 + $0xe8] sm:$0xf]
    %v426 = vld [vmem:[%s366 + $0xec] sm:$0xf]
    %v427 = vld [vmem:[%s366 + $0xf0] sm:$0xf]
    %v428 = vld [vmem:[%s366 + $0xf4] sm:$0xf]
    %v429 = vld [vmem:[%s366 + $0xf8] sm:$0xf]
    %v430 = vld [vmem:[%s366 + $0xfc] sm:$0xf]
    %v431 = vld [vmem:[%s366 + $0x100] sm:$0xf]
    %v432 = vld [vmem:[%s366 + $0x104] sm:$0xf]
    %v433 = vld [vmem:[%s366 + $0x108] sm:$0xf]
    %v434 = vld [vmem:[%s366 + $0x10c] sm:$0xf]
    %v435 = vld [vmem:[%s366 + $0x110] sm:$0xf]
    %v436 = vld [vmem:[%s366 + $0x114] sm:$0xf]
    %v437 = vld [vmem:[%s366 + $0x118] sm:$0xf]
    %v438 = vld [vmem:[%s366 + $0x11c] sm:$0xf]
    %v439 = vld [vmem:[%s366 + $0x120] sm:$0xf]
    %v440 = vld [vmem:[%s366 + $0x124] sm:$0xf]
    %v441 = vld [vmem:[%s366 + $0x128] sm:$0xf]
    %v442 = vld [vmem:[%s366 + $0x12c] sm:$0xf]
    %v443 = vld [vmem:[%s366 + $0x130] sm:$0xf]
    %v444 = vld [vmem:[%s366 + $0x134] sm:$0xf]
    %v445 = vld [vmem:[%s366 + $0x138] sm:$0xf]
    %v446 = vld [vmem:[%s366 + $0x13c] sm:$0xf]
    %v447 = vld [vmem:[%s366 + $0x140] sm:$0xf]
    %v448 = vld [vmem:[%s366 + $0x144] sm:$0xf]
    %v449 = vld [vmem:[%s366 + $0x148] sm:$0xf]
    %v450 = vld [vmem:[%s366 + $0x14c] sm:$0xf]
    %v451 = vld [vmem:[%s366 + $0x150] sm:$0xf]
    %v452 = vld [vmem:[%s366 + $0x154] sm:$0xf]
    %v453 = vld [vmem:[%s366 + $0x158] sm:$0xf]
    %v454 = vld [vmem:[%s366 + $0x15c] sm:$0xf]
    %v455 = vld [vmem:[%s366 + $0x160] sm:$0xf]
    %v456 = vld [vmem:[%s366 + $0x164] sm:$0xf]
    %v457 = vld [vmem:[%s366 + $0x168] sm:$0xf]
    %v458 = vld [vmem:[%s366 + $0x16c] sm:$0xf]
    %v459 = vld [vmem:[%s366 + $0x170] sm:$0xf]
    %v460 = vld [vmem:[%s366 + $0x174] sm:$0xf]
    %v461 = vld [vmem:[%s366 + $0x178] sm:$0xf]
    %v462 = vld [vmem:[%s366 + $0x17c] sm:$0xf]
    %v463 = vld [vmem:[%s366 + $0x180] sm:$0xf]
    %v464 = vld [vmem:[%s366 + $0x184] sm:$0xf]
    %v465 = vld [vmem:[%s366 + $0x188] sm:$0xf]
    %v466 = vld [vmem:[%s366 + $0x18c] sm:$0xf]
    %v467 = vld [vmem:[%s366 + $0x190] sm:$0xf]
    %v468 = vld [vmem:[%s366 + $0x194] sm:$0xf]
    %v469 = vld [vmem:[%s366 + $0x198] sm:$0xf]
    %v470 = vld [vmem:[%s366 + $0x19c] sm:$0xf]
    %v471 = vld [vmem:[%s366 + $0x1a0] sm:$0xf]
    %v472 = vld [vmem:[%s366 + $0x1a4] sm:$0xf]
    %v473 = vld [vmem:[%s366 + $0x1a8] sm:$0xf]
    %v474 = vld [vmem:[%s366 + $0x1ac] sm:$0xf]
    %v475 = vld [vmem:[%s366 + $0x1b0] sm:$0xf]
    %v476 = vld [vmem:[%s366 + $0x1b4] sm:$0xf]
    %v477 = vld [vmem:[%s366 + $0x1b8] sm:$0xf]
    %v478 = vld [vmem:[%s366 + $0x1bc] sm:$0xf]
    %v479 = vld [vmem:[%s366 + $0x1c0] sm:$0xf]
    %v480 = vld [vmem:[%s366 + $0x1c4] sm:$0xf]
    %v481 = vld [vmem:[%s366 + $0x1c8] sm:$0xf]
    %v482 = vld [vmem:[%s366 + $0x1cc] sm:$0xf]
    %v483 = vld [vmem:[%s366 + $0x1d0] sm:$0xf]
    %v484 = vld [vmem:[%s366 + $0x1d4] sm:$0xf]
    %v485 = vld [vmem:[%s366 + $0x1d8] sm:$0xf]
    %v486 = vld [vmem:[%s366 + $0x1dc] sm:$0xf]
    %v487 = vld [vmem:[%s366 + $0x1e0] sm:$0xf]
    %v488 = vld [vmem:[%s366 + $0x1e4] sm:$0xf]
    %v489 = vld [vmem:[%s366 + $0x1e8] sm:$0xf]
    %v490 = vld [vmem:[%s366 + $0x1ec] sm:$0xf]
    %v491 = vld [vmem:[%s366 + $0x1f0] sm:$0xf]
    %v492 = vld [vmem:[%s366 + $0x1f4] sm:$0xf]
    %v493 = vld [vmem:[%s366 + $0x1f8] sm:$0xf]
    %v494 = vld [vmem:[%s366 + $0x1fc] sm:$0xf]
    %v623 = vunpack.c.l.b16 %v367
    %v624 = vunpack.c.l.b16 %v368
    %v625 = vunpack.c.l.b16 %v369
    %v626 = vunpack.c.l.b16 %v370
    %v627 = vunpack.c.l.b16 %v371
    %v628 = vunpack.c.l.b16 %v372
    %v629 = vunpack.c.l.b16 %v373
    %v630 = vunpack.c.l.b16 %v374
    %v631 = vunpack.c.l.b16 %v375
    %v632 = vunpack.c.l.b16 %v376
    %v633 = vunpack.c.l.b16 %v377
    %v634 = vunpack.c.l.b16 %v378
    %v635 = vunpack.c.l.b16 %v379
    %v636 = vunpack.c.l.b16 %v380
    %v637 = vunpack.c.l.b16 %v381
    %v638 = vunpack.c.l.b16 %v382
    %v639 = vunpack.c.l.b16 %v383
    %v640 = vunpack.c.l.b16 %v384
    %v641 = vunpack.c.l.b16 %v385
    %v642 = vunpack.c.l.b16 %v386
    %v643 = vunpack.c.l.b16 %v387
    %v644 = vunpack.c.l.b16 %v388
    %v645 = vunpack.c.l.b16 %v389
    %v646 = vunpack.c.l.b16 %v390
    %v647 = vunpack.c.l.b16 %v391
    %v648 = vunpack.c.l.b16 %v392
    %v649 = vunpack.c.l.b16 %v393
    %v650 = vunpack.c.l.b16 %v394
    %v651 = vunpack.c.l.b16 %v395
    %v652 = vunpack.c.l.b16 %v396
    %v653 = vunpack.c.l.b16 %v397
    %v654 = vunpack.c.l.b16 %v398
    %v655 = vunpack.c.l.b16 %v399
    %v656 = vunpack.c.l.b16 %v400
    %v657 = vunpack.c.l.b16 %v401
    %v658 = vunpack.c.l.b16 %v402
    %v659 = vunpack.c.l.b16 %v403
    %v660 = vunpack.c.l.b16 %v404
    %v661 = vunpack.c.l.b16 %v405
    %v662 = vunpack.c.l.b16 %v406
    %v663 = vunpack.c.l.b16 %v407
    %v664 = vunpack.c.l.b16 %v408
    %v665 = vunpack.c.l.b16 %v409
    %v666 = vunpack.c.l.b16 %v410
    %v667 = vunpack.c.l.b16 %v411
    %v668 = vunpack.c.l.b16 %v412
    %v669 = vunpack.c.l.b16 %v413
    %v670 = vunpack.c.l.b16 %v414
    %v671 = vunpack.c.l.b16 %v415
    %v672 = vunpack.c.l.b16 %v416
    %v673 = vunpack.c.l.b16 %v417
    %v674 = vunpack.c.l.b16 %v418
    %v675 = vunpack.c.l.b16 %v419
    %v676 = vunpack.c.l.b16 %v420
    %v677 = vunpack.c.l.b16 %v421
    %v678 = vunpack.c.l.b16 %v422
    %v679 = vunpack.c.l.b16 %v423
    %v680 = vunpack.c.l.b16 %v424
    %v681 = vunpack.c.l.b16 %v425
    %v682 = vunpack.c.l.b16 %v426
    %v683 = vunpack.c.l.b16 %v427
    %v684 = vunpack.c.l.b16 %v428
    %v685 = vunpack.c.l.b16 %v429
    %v686 = vunpack.c.l.b16 %v430
    %v687 = vunpack.c.l.b16 %v431
    %v688 = vunpack.c.l.b16 %v432
    %v689 = vunpack.c.l.b16 %v433
    %v690 = vunpack.c.l.b16 %v434
    %v691 = vunpack.c.l.b16 %v435
    %v692 = vunpack.c.l.b16 %v436
    %v693 = vunpack.c.l.b16 %v437
    %v694 = vunpack.c.l.b16 %v438
    %v695 = vunpack.c.l.b16 %v439
    %v696 = vunpack.c.l.b16 %v440
    %v697 = vunpack.c.l.b16 %v441
    %v698 = vunpack.c.l.b16 %v442
    %v699 = vunpack.c.l.b16 %v443
    %v700 = vunpack.c.l.b16 %v444
    %v701 = vunpack.c.l.b16 %v445
    %v702 = vunpack.c.l.b16 %v446
    %v703 = vunpack.c.l.b16 %v447
    %v704 = vunpack.c.l.b16 %v448
    %v705 = vunpack.c.l.b16 %v449
    %v706 = vunpack.c.l.b16 %v450
    %v707 = vunpack.c.l.b16 %v451
    %v708 = vunpack.c.l.b16 %v452
    %v709 = vunpack.c.l.b16 %v453
    %v710 = vunpack.c.l.b16 %v454
    %v711 = vunpack.c.l.b16 %v455
    %v712 = vunpack.c.l.b16 %v456
    %v713 = vunpack.c.l.b16 %v457
    %v714 = vunpack.c.l.b16 %v458
    %v715 = vunpack.c.l.b16 %v459
    %v716 = vunpack.c.l.b16 %v460
    %v717 = vunpack.c.l.b16 %v461
    %v718 = vunpack.c.l.b16 %v462
    %v719 = vunpack.c.l.b16 %v463
    %v720 = vunpack.c.l.b16 %v464
    %v721 = vunpack.c.l.b16 %v465
    %v722 = vunpack.c.l.b16 %v466
    %v723 = vunpack.c.l.b16 %v467
    %v724 = vunpack.c.l.b16 %v468
    %v725 = vunpack.c.l.b16 %v469
    %v726 = vunpack.c.l.b16 %v470
    %v727 = vunpack.c.l.b16 %v471
    %v728 = vunpack.c.l.b16 %v472
    %v729 = vunpack.c.l.b16 %v473
    %v730 = vunpack.c.l.b16 %v474
    %v731 = vunpack.c.l.b16 %v475
    %v732 = vunpack.c.l.b16 %v476
    %v733 = vunpack.c.l.b16 %v477
    %v734 = vunpack.c.l.b16 %v478
    %v735 = vunpack.c.l.b16 %v479
    %v736 = vunpack.c.l.b16 %v480
    %v737 = vunpack.c.l.b16 %v481
    %v738 = vunpack.c.l.b16 %v482
    %v739 = vunpack.c.l.b16 %v483
    %v740 = vunpack.c.l.b16 %v484
    %v741 = vunpack.c.l.b16 %v485
    %v742 = vunpack.c.l.b16 %v486
    %v743 = vunpack.c.l.b16 %v487
    %v744 = vunpack.c.l.b16 %v488
    %v745 = vunpack.c.l.b16 %v489
    %v746 = vunpack.c.l.b16 %v490
    %v747 = vunpack.c.l.b16 %v491
    %v748 = vunpack.c.l.b16 %v492
    %v749 = vunpack.c.l.b16 %v493
    %v750 = vunpack.c.l.b16 %v494
    %v751 = vpack.c.b16 %v624, %v623
    %v752 = vpack.c.b16 %v626, %v625
    %v753 = vpack.c.b16 %v628, %v627
    %v754 = vpack.c.b16 %v630, %v629
    %v755 = vpack.c.b16 %v632, %v631
    %v756 = vpack.c.b16 %v634, %v633
    %v757 = vpack.c.b16 %v636, %v635
    %v758 = vpack.c.b16 %v638, %v637
    %v759 = vpack.c.b16 %v640, %v639
    %v760 = vpack.c.b16 %v642, %v641
    %v761 = vpack.c.b16 %v644, %v643
    %v762 = vpack.c.b16 %v646, %v645
    %v763 = vpack.c.b16 %v648, %v647
    %v764 = vpack.c.b16 %v650, %v649
    %v765 = vpack.c.b16 %v652, %v651
    %v766 = vpack.c.b16 %v654, %v653
    %v767 = vpack.c.b16 %v656, %v655
    %v768 = vpack.c.b16 %v658, %v657
    %v769 = vpack.c.b16 %v660, %v659
    %v770 = vpack.c.b16 %v662, %v661
    %v771 = vpack.c.b16 %v664, %v663
    %v772 = vpack.c.b16 %v666, %v665
    %v773 = vpack.c.b16 %v668, %v667
    %v774 = vpack.c.b16 %v670, %v669
    %v775 = vpack.c.b16 %v672, %v671
    %v776 = vpack.c.b16 %v674, %v673
    %v777 = vpack.c.b16 %v676, %v675
    %v778 = vpack.c.b16 %v678, %v677
    %v779 = vpack.c.b16 %v680, %v679
    %v780 = vpack.c.b16 %v682, %v681
    %v781 = vpack.c.b16 %v684, %v683
    %v782 = vpack.c.b16 %v686, %v685
    %v783 = vpack.c.b16 %v688, %v687
    %v784 = vpack.c.b16 %v690, %v689
    %v785 = vpack.c.b16 %v692, %v691
    %v786 = vpack.c.b16 %v694, %v693
    %v787 = vpack.c.b16 %v696, %v695
    %v788 = vpack.c.b16 %v698, %v697
    %v789 = vpack.c.b16 %v700, %v699
    %v790 = vpack.c.b16 %v702, %v701
    %v791 = vpack.c.b16 %v704, %v703
    %v792 = vpack.c.b16 %v706, %v705
    %v793 = vpack.c.b16 %v708, %v707
    %v794 = vpack.c.b16 %v710, %v709
    %v795 = vpack.c.b16 %v712, %v711
    %v796 = vpack.c.b16 %v714, %v713
    %v797 = vpack.c.b16 %v716, %v715
    %v798 = vpack.c.b16 %v718, %v717
    %v799 = vpack.c.b16 %v720, %v719
    %v800 = vpack.c.b16 %v722, %v721
    %v801 = vpack.c.b16 %v724, %v723
    %v802 = vpack.c.b16 %v726, %v725
    %v803 = vpack.c.b16 %v728, %v727
    %v804 = vpack.c.b16 %v730, %v729
    %v805 = vpack.c.b16 %v732, %v731
    %v806 = vpack.c.b16 %v734, %v733
    %v807 = vpack.c.b16 %v736, %v735
    %v808 = vpack.c.b16 %v738, %v737
    %v809 = vpack.c.b16 %v740, %v739
    %v810 = vpack.c.b16 %v742, %v741
    %v811 = vpack.c.b16 %v744, %v743
    %v812 = vpack.c.b16 %v746, %v745
    %v813 = vpack.c.b16 %v748, %v747
    %v814 = vpack.c.b16 %v750, %v749
    %879 = vmatprep.subr.bf16.mxu0 0
    %880 = vmatpush1.bf16.msra.mxu0 %v751
    %881 = vmatprep.subr.bf16.mxu0 0
    %882 = vmatpush1.bf16.msra.mxu0 %v752
    %883 = vmatprep.subr.bf16.mxu0 0
    %884 = vmatpush1.bf16.msra.mxu0 %v753
    %885 = vmatprep.subr.bf16.mxu0 0
    %886 = vmatpush1.bf16.msra.mxu0 %v754
    %887 = vmatprep.subr.bf16.mxu0 0
    %888 = vmatpush1.bf16.msra.mxu0 %v755
    %889 = vmatprep.subr.bf16.mxu0 0
    %890 = vmatpush1.bf16.msra.mxu0 %v756
    %891 = vmatprep.subr.bf16.mxu0 0
    %892 = vmatpush1.bf16.msra.mxu0 %v757
    %893 = vmatprep.subr.bf16.mxu0 0
    %894 = vmatpush1.bf16.msra.mxu0 %v758
    %895 = vmatprep.subr.bf16.mxu0 0
    %896 = vmatpush1.bf16.msra.mxu0 %v759
    %897 = vmatprep.subr.bf16.mxu0 0
    %898 = vmatpush1.bf16.msra.mxu0 %v760
    %899 = vmatprep.subr.bf16.mxu0 0
    %900 = vmatpush1.bf16.msra.mxu0 %v761
    %901 = vmatprep.subr.bf16.mxu0 0
    %902 = vmatpush1.bf16.msra.mxu0 %v762
    %903 = vmatprep.subr.bf16.mxu0 0
    %904 = vmatpush1.bf16.msra.mxu0 %v763
    %905 = vmatprep.subr.bf16.mxu0 0
    %906 = vmatpush1.bf16.msra.mxu0 %v764
    %907 = vmatprep.subr.bf16.mxu0 0
    %908 = vmatpush1.bf16.msra.mxu0 %v765
    %909 = vmatprep.subr.bf16.mxu0 0
    %910 = vmatpush1.bf16.msra.mxu0 %v766
    %911 = vmatprep.mubr.bf16.mxu0 %v80
    %912 = vmatmul.mubr.bf16.gmra.mrb[0].mxu0 %v79
    %v913 = vpop.f32.mrb[0].mxu0
    %v914 = vadd.f32 0.0, %v913
    %v915 = vpop.f32.mrb[0].mxu0
    %v916 = vpop.f32.mrb[0].mxu0
    %v917 = vadd.f32 0.0, %v916
    %v918 = vpop.f32.mrb[0].mxu0
    %919 = vmatprep.mubr.bf16.mxu0 %v82
    %920 = vmatmul.mubr.bf16.gmra.mrb[0].mxu0 %v81
    %v921 = vpop.f32.mrb[0].mxu0
    %v922 = vadd.f32 0.0, %v921
    %v923 = vpop.f32.mrb[0].mxu0
    %v924 = vpop.f32.mrb[0].mxu0
    %v925 = vadd.f32 0.0, %v924
    %v926 = vpop.f32.mrb[0].mxu0
    %927 = vmatprep.mubr.bf16.mxu0 %v84
    %928 = vmatmul.mubr.bf16.gmra.mrb[0].mxu0 %v83
    %v929 = vpop.f32.mrb[0].mxu0
    %v930 = vadd.f32 0.0, %v929
    %v931 = vpop.f32.mrb[0].mxu0
    %v932 = vpop.f32.mrb[0].mxu0
    %v933 = vpop.f32.mrb[0].mxu0
    %934 = vdwg.mxu0
    %935 = vmatprep.subr.bf16.mxu0 0
    %936 = vmatpush1.bf16.msra.mxu0 %v767
    %937 = vmatprep.subr.bf16.mxu0 0
    %938 = vmatpush1.bf16.msra.mxu0 %v768
    %939 = vmatprep.subr.bf16.mxu0 0
    %940 = vmatpush1.bf16.msra.mxu0 %v769
    %941 = vmatprep.subr.bf16.mxu0 0
    %942 = vmatpush1.bf16.msra.mxu0 %v770
    %943 = vmatprep.subr.bf16.mxu0 0
    %944 = vmatpush1.bf16.msra.mxu0 %v771
    %945 = vmatprep.subr.bf16.mxu0 0
    %946 = vmatpush1.bf16.msra.mxu0 %v772
    %947 = vmatprep.subr.bf16.mxu0 0
    %948 = vmatpush1.bf16.msra.mxu0 %v773
    %949 = vmatprep.subr.bf16.mxu0 0
    %950 = vmatpush1.bf16.msra.mxu0 %v774
    %951 = vmatprep.subr.bf16.mxu0 0
    %952 = vmatpush1.bf16.msra.mxu0 %v775
    %953 = vmatprep.subr.bf16.mxu0 0
    %954 = vmatpush1.bf16.msra.mxu0 %v776
    %955 = vmatprep.subr.bf16.mxu0 0
    %956 = vmatpush1.bf16.msra.mxu0 %v777
    %957 = vmatprep.subr.bf16.mxu0 0
    %958 = vmatpush1.bf16.msra.mxu0 %v778
    %959 = vmatprep.subr.bf16.mxu0 0
    %960 = vmatpush1.bf16.msra.mxu0 %v779
    %961 = vmatprep.subr.bf16.mxu0 0
    %962 = vmatpush1.bf16.msra.mxu0 %v780
    %963 = vmatprep.subr.bf16.mxu0 0
    %964 = vmatpush1.bf16.msra.mxu0 %v781
    %965 = vmatprep.subr.bf16.mxu0 0
    %966 = vmatpush1.bf16.msra.mxu0 %v782
    %967 = vmatprep.mubr.bf16.mxu0 %v131
    %968 = vmatmul.mubr.bf16.gmra.mrb[0].mxu0 %v130
    %v969 = vpop.f32.mrb[0].mxu0
    %v970 = vadd.f32 %v914, %v969
    %v971 = vpop.f32.mrb[0].mxu0
    %v972 = vpop.f32.mrb[0].mxu0
    %v973 = vadd.f32 %v917, %v972
    %v974 = vpop.f32.mrb[0].mxu0
    %975 = vmatprep.mubr.bf16.mxu0 %v133
    %976 = vmatmul.mubr.bf16.gmra.mrb[0].mxu0 %v132
    %v977 = vpop.f32.mrb[0].mxu0
    %v978 = vadd.f32 %v922, %v977
    %v979 = vpop.f32.mrb[0].mxu0
    %v980 = vpop.f32.mrb[0].mxu0
    %v981 = vadd.f32 %v925, %v980
    %v982 = vpop.f32.mrb[0].mxu0
    %983 = vmatprep.mubr.bf16.mxu0 %v135
    %984 = vmatmul.mubr.bf16.gmra.mrb[0].mxu0 %v134
    %v985 = vpop.f32.mrb[0].mxu0
    %v986 = vadd.f32 %v930, %v985
    %v987 = vpop.f32.mrb[0].mxu0
    %v988 = vpop.f32.mrb[0].mxu0
    %v989 = vpop.f32.mrb[0].mxu0
    %990 = vdwg.mxu0
    %991 = vmatprep.subr.bf16.mxu0 0
    %992 = vmatpush1.bf16.msra.mxu0 %v783
    %993 = vmatprep.subr.bf16.mxu0 0
    %994 = vmatpush1.bf16.msra.mxu0 %v784
    %995 = vmatprep.subr.bf16.mxu0 0
    %996 = vmatpush1.bf16.msra.mxu0 %v785
    %997 = vmatprep.subr.bf16.mxu0 0
    %998 = vmatpush1.bf16.msra.mxu0 %v786
    %999 = vmatprep.subr.bf16.mxu0 0
    %1000 = vmatpush1.bf16.msra.mxu0 %v787
    %1001 = vmatprep.subr.bf16.mxu0 0
    %1002 = vmatpush1.bf16.msra.mxu0 %v788
    %1003 = vmatprep.subr.bf16.mxu0 0
    %1004 = vmatpush1.bf16.msra.mxu0 %v789
    %1005 = vmatprep.subr.bf16.mxu0 0
    %1006 = vmatpush1.bf16.msra.mxu0 %v790
    %1007 = vmatprep.subr.bf16.mxu0 0
    %1008 = vmatpush1.bf16.msra.mxu0 %v791
    %1009 = vmatprep.subr.bf16.mxu0 0
    %1010 = vmatpush1.bf16.msra.mxu0 %v792
    %1011 = vmatprep.subr.bf16.mxu0 0
    %1012 = vmatpush1.bf16.msra.mxu0 %v793
    %1013 = vmatprep.subr.bf16.mxu0 0
    %1014 = vmatpush1.bf16.msra.mxu0 %v794
    %1015 = vmatprep.subr.bf16.mxu0 0
    %1016 = vmatpush1.bf16.msra.mxu0 %v795
    %1017 = vmatprep.subr.bf16.mxu0 0
    %1018 = vmatpush1.bf16.msra.mxu0 %v796
    %1019 = vmatprep.subr.bf16.mxu0 0
    %1020 = vmatpush1.bf16.msra.mxu0 %v797
    %1021 = vmatprep.subr.bf16.mxu0 0
    %1022 = vmatpush1.bf16.msra.mxu0 %v798
    %1023 = vmatprep.mubr.bf16.mxu0 %v182
    %1024 = vmatmul.mubr.bf16.gmra.mrb[0].mxu0 %v181
    %v1025 = vpop.f32.mrb[0].mxu0
    %v1026 = vadd.f32 %v970, %v1025
    %v1027 = vpop.f32.mrb[0].mxu0
    %v1028 = vpop.f32.mrb[0].mxu0
    %v1029 = vadd.f32 %v973, %v1028
    %v1030 = vpop.f32.mrb[0].mxu0
    %1031 = vmatprep.mubr.bf16.mxu0 %v184
    %1032 = vmatmul.mubr.bf16.gmra.mrb[0].mxu0 %v183
    %v1033 = vpop.f32.mrb[0].mxu0
    %v1034 = vadd.f32 %v978, %v1033
    %v1035 = vpop.f32.mrb[0].mxu0
    %v1036 = vpop.f32.mrb[0].mxu0
    %v1037 = vadd.f32 %v981, %v1036
    %v1038 = vpop.f32.mrb[0].mxu0
    %1039 = vmatprep.mubr.bf16.mxu0 %v186
    %1040 = vmatmul.mubr.bf16.gmra.mrb[0].mxu0 %v185
    %v1041 = vpop.f32.mrb[0].mxu0
    %v1042 = vadd.f32 %v986, %v1041
    %v1043 = vpop.f32.mrb[0].mxu0
    %v1044 = vpop.f32.mrb[0].mxu0
    %v1045 = vpop.f32.mrb[0].mxu0
    %1046 = vdwg.mxu0
    %1047 = vmatprep.subr.bf16.mxu0 0
    %1048 = vmatpush1.bf16.msra.mxu0 %v799
    %1049 = vmatprep.subr.bf16.mxu0 0
    %1050 = vmatpush1.bf16.msra.mxu0 %v800
    %1051 = vmatprep.subr.bf16.mxu0 0
    %1052 = vmatpush1.bf16.msra.mxu0 %v801
    %1053 = vmatprep.subr.bf16.mxu0 0
    %1054 = vmatpush1.bf16.msra.mxu0 %v802
    %1055 = vmatprep.subr.bf16.mxu0 0
    %1056 = vmatpush1.bf16.msra.mxu0 %v803
    %1057 = vmatprep.subr.bf16.mxu0 0
    %1058 = vmatpush1.bf16.msra.mxu0 %v804
    %1059 = vmatprep.subr.bf16.mxu0 0
    %1060 = vmatpush1.bf16.msra.mxu0 %v805
    %1061 = vmatprep.subr.bf16.mxu0 0
    %1062 = vmatpush1.bf16.msra.mxu0 %v806
    %1063 = vmatprep.subr.bf16.mxu0 0
    %1064 = vmatpush1.bf16.msra.mxu0 %v807
    %1065 = vmatprep.subr.bf16.mxu0 0
    %1066 = vmatpush1.bf16.msra.mxu0 %v808
    %1067 = vmatprep.subr.bf16.mxu0 0
    %1068 = vmatpush1.bf16.msra.mxu0 %v809
    %1069 = vmatprep.subr.bf16.mxu0 0
    %1070 = vmatpush1.bf16.msra.mxu0 %v810
    %1071 = vmatprep.subr.bf16.mxu0 0
    %1072 = vmatpush1.bf16.msra.mxu0 %v811
    %1073 = vmatprep.subr.bf16.mxu0 0
    %1074 = vmatpush1.bf16.msra.mxu0 %v812
    %1075 = vmatprep.subr.bf16.mxu0 0
    %1076 = vmatpush1.bf16.msra.mxu0 %v813
    %1077 = vmatprep.subr.bf16.mxu0 0
    %1078 = vmatpush1.bf16.msra.mxu0 %v814
    %1079 = vmatprep.mubr.bf16.mxu0 %v233
    %1080 = vmatmul.mubr.bf16.gmra.mrb[0].mxu0 %v232
    %v1081 = vpop.f32.mrb[0].mxu0
    %v1082 = vadd.f32 %v1026, %v1081
    %v1083 = vpop.f32.mrb[0].mxu0
    %v1084 = vpop.f32.mrb[0].mxu0
    %v1085 = vadd.f32 %v1029, %v1084
    %v1086 = vpop.f32.mrb[0].mxu0
    %1087 = vmatprep.mubr.bf16.mxu0 %v235
    %1088 = vmatmul.mubr.bf16.gmra.mrb[0].mxu0 %v234
    %v1089 = vpop.f32.mrb[0].mxu0
    %v1090 = vadd.f32 %v1034, %v1089
    %v1091 = vpop.f32.mrb[0].mxu0
    %v1092 = vpop.f32.mrb[0].mxu0
    %v1093 = vadd.f32 %v1037, %v1092
    %v1094 = vpop.f32.mrb[0].mxu0
    %1095 = vmatprep.mubr.bf16.mxu0 %v237
    %1096 = vmatmul.mubr.bf16.gmra.mrb[0].mxu0 %v236
    %v1097 = vpop.f32.mrb[0].mxu0
    %v1098 = vadd.f32 %v1042, %v1097
    %v1099 = vpop.f32.mrb[0].mxu0
    %v1100 = vpop.f32.mrb[0].mxu0
    %v1101 = vpop.f32.mrb[0].mxu0
    %1102 = vdwg.mxu0
    %v1231 = vunpack.c.l.b16 %v238
    %v1232 = vunpack.c.l.b16 %v239
    %v1233 = vunpack.c.l.b16 %v240
    %v1234 = vunpack.c.l.b16 %v241
    %v1235 = vunpack.c.l.b16 %v242
    %v1236 = vunpack.c.l.b16 %v243
    %v1237 = vunpack.c.l.b16 %v244
    %v1238 = vunpack.c.l.b16 %v245
    %v1239 = vunpack.c.l.b16 %v246
    %v1240 = vunpack.c.l.b16 %v247
    %v1241 = vunpack.c.l.b16 %v248
    %v1242 = vunpack.c.l.b16 %v249
    %v1243 = vunpack.c.l.b16 %v250
    %v1244 = vunpack.c.l.b16 %v251
    %v1245 = vunpack.c.l.b16 %v252
    %v1246 = vunpack.c.l.b16 %v253
    %v1247 = vunpack.c.l.b16 %v254
    %v1248 = vunpack.c.l.b16 %v255
    %v1249 = vunpack.c.l.b16 %v256
    %v1250 = vunpack.c.l.b16 %v257
    %v1251 = vunpack.c.l.b16 %v258
    %v1252 = vunpack.c.l.b16 %v259
    %v1253 = vunpack.c.l.b16 %v260
    %v1254 = vunpack.c.l.b16 %v261
    %v1255 = vunpack.c.l.b16 %v262
    %v1256 = vunpack.c.l.b16 %v263
    %v1257 = vunpack.c.l.b16 %v264
    %v1258 = vunpack.c.l.b16 %v265
    %v1259 = vunpack.c.l.b16 %v266
    %v1260 = vunpack.c.l.b16 %v267
    %v1261 = vunpack.c.l.b16 %v268
    %v1262 = vunpack.c.l.b16 %v269
    %v1263 = vunpack.c.l.b16 %v270
    %v1264 = vunpack.c.l.b16 %v271
    %v1265 = vunpack.c.l.b16 %v272
    %v1266 = vunpack.c.l.b16 %v273
    %v1267 = vunpack.c.l.b16 %v274
    %v1268 = vunpack.c.l.b16 %v275
    %v1269 = vunpack.c.l.b16 %v276
    %v1270 = vunpack.c.l.b16 %v277
    %v1271 = vunpack.c.l.b16 %v278
    %v1272 = vunpack.c.l.b16 %v279
    %v1273 = vunpack.c.l.b16 %v280
    %v1274 = vunpack.c.l.b16 %v281
    %v1275 = vunpack.c.l.b16 %v282
    %v1276 = vunpack.c.l.b16 %v283
    %v1277 = vunpack.c.l.b16 %v284
    %v1278 = vunpack.c.l.b16 %v285
    %v1279 = vunpack.c.l.b16 %v286
    %v1280 = vunpack.c.l.b16 %v287
    %v1281 = vunpack.c.l.b16 %v288
    %v1282 = vunpack.c.l.b16 %v289
    %v1283 = vunpack.c.l.b16 %v290
    %v1284 = vunpack.c.l.b16 %v291
    %v1285 = vunpack.c.l.b16 %v292
    %v1286 = vunpack.c.l.b16 %v293
    %v1287 = vunpack.c.l.b16 %v294
    %v1288 = vunpack.c.l.b16 %v295
    %v1289 = vunpack.c.l.b16 %v296
    %v1290 = vunpack.c.l.b16 %v297
    %v1291 = vunpack.c.l.b16 %v298
    %v1292 = vunpack.c.l.b16 %v299
    %v1293 = vunpack.c.l.b16 %v300
    %v1294 = vunpack.c.l.b16 %v301
    %v1295 = vunpack.c.l.b16 %v302
    %v1296 = vunpack.c.l.b16 %v303
    %v1297 = vunpack.c.l.b16 %v304
    %v1298 = vunpack.c.l.b16 %v305
    %v1299 = vunpack.c.l.b16 %v306
    %v1300 = vunpack.c.l.b16 %v307
    %v1301 = vunpack.c.l.b16 %v308
    %v1302 = vunpack.c.l.b16 %v309
    %v1303 = vunpack.c.l.b16 %v310
    %v1304 = vunpack.c.l.b16 %v311
    %v1305 = vunpack.c.l.b16 %v312
    %v1306 = vunpack.c.l.b16 %v313
    %v1307 = vunpack.c.l.b16 %v314
    %v1308 = vunpack.c.l.b16 %v315
    %v1309 = vunpack.c.l.b16 %v316
    %v1310 = vunpack.c.l.b16 %v317
    %v1311 = vunpack.c.l.b16 %v318
    %v1312 = vunpack.c.l.b16 %v319
    %v1313 = vunpack.c.l.b16 %v320
    %v1314 = vunpack.c.l.b16 %v321
    %v1315 = vunpack.c.l.b16 %v322
    %v1316 = vunpack.c.l.b16 %v323
    %v1317 = vunpack.c.l.b16 %v324
    %v1318 = vunpack.c.l.b16 %v325
    %v1319 = vunpack.c.l.b16 %v326
    %v1320 = vunpack.c.l.b16 %v327
    %v1321 = vunpack.c.l.b16 %v328
    %v1322 = vunpack.c.l.b16 %v329
    %v1323 = vunpack.c.l.b16 %v330
    %v1324 = vunpack.c.l.b16 %v331
    %v1325 = vunpack.c.l.b16 %v332
    %v1326 = vunpack.c.l.b16 %v333
    %v1327 = vunpack.c.l.b16 %v334
    %v1328 = vunpack.c.l.b16 %v335
    %v1329 = vunpack.c.l.b16 %v336
    %v1330 = vunpack.c.l.b16 %v337
    %v1331 = vunpack.c.l.b16 %v338
    %v1332 = vunpack.c.l.b16 %v339
    %v1333 = vunpack.c.l.b16 %v340
    %v1334 = vunpack.c.l.b16 %v341
    %v1335 = vunpack.c.l.b16 %v342
    %v1336 = vunpack.c.l.b16 %v343
    %v1337 = vunpack.c.l.b16 %v344
    %v1338 = vunpack.c.l.b16 %v345
    %v1339 = vunpack.c.l.b16 %v346
    %v1340 = vunpack.c.l.b16 %v347
    %v1341 = vunpack.c.l.b16 %v348
    %v1342 = vunpack.c.l.b16 %v349
    %v1343 = vunpack.c.l.b16 %v350
    %v1344 = vunpack.c.l.b16 %v351
    %v1345 = vunpack.c.l.b16 %v352
    %v1346 = vunpack.c.l.b16 %v353
    %v1347 = vunpack.c.l.b16 %v354
    %v1348 = vunpack.c.l.b16 %v355
    %v1349 = vunpack.c.l.b16 %v356
    %v1350 = vunpack.c.l.b16 %v357
    %v1351 = vunpack.c.l.b16 %v358
    %v1352 = vunpack.c.l.b16 %v359
    %v1353 = vunpack.c.l.b16 %v360
    %v1354 = vunpack.c.l.b16 %v361
    %v1355 = vunpack.c.l.b16 %v362
    %v1356 = vunpack.c.l.b16 %v363
    %v1357 = vunpack.c.l.b16 %v364
    %v1358 = vunpack.c.l.b16 %v365
    %v1359 = vpack.c.b16 %v1232, %v1231
    %v1360 = vpack.c.b16 %v1234, %v1233
    %v1361 = vpack.c.b16 %v1236, %v1235
    %v1362 = vpack.c.b16 %v1238, %v1237
    %v1363 = vpack.c.b16 %v1240, %v1239
    %v1364 = vpack.c.b16 %v1242, %v1241
    %v1365 = vpack.c.b16 %v1244, %v1243
    %v1366 = vpack.c.b16 %v1246, %v1245
    %v1367 = vpack.c.b16 %v1248, %v1247
    %v1368 = vpack.c.b16 %v1250, %v1249
    %v1369 = vpack.c.b16 %v1252, %v1251
    %v1370 = vpack.c.b16 %v1254, %v1253
    %v1371 = vpack.c.b16 %v1256, %v1255
    %v1372 = vpack.c.b16 %v1258, %v1257
    %v1373 = vpack.c.b16 %v1260, %v1259
    %v1374 = vpack.c.b16 %v1262, %v1261
    %v1375 = vpack.c.b16 %v1264, %v1263
    %v1376 = vpack.c.b16 %v1266, %v1265
    %v1377 = vpack.c.b16 %v1268, %v1267
    %v1378 = vpack.c.b16 %v1270, %v1269
    %v1379 = vpack.c.b16 %v1272, %v1271
    %v1380 = vpack.c.b16 %v1274, %v1273
    %v1381 = vpack.c.b16 %v1276, %v1275
    %v1382 = vpack.c.b16 %v1278, %v1277
    %v1383 = vpack.c.b16 %v1280, %v1279
    %v1384 = vpack.c.b16 %v1282, %v1281
    %v1385 = vpack.c.b16 %v1284, %v1283
    %v1386 = vpack.c.b16 %v1286, %v1285
    %v1387 = vpack.c.b16 %v1288, %v1287
    %v1388 = vpack.c.b16 %v1290, %v1289
    %v1389 = vpack.c.b16 %v1292, %v1291
    %v1390 = vpack.c.b16 %v1294, %v1293
    %v1391 = vpack.c.b16 %v1296, %v1295
    %v1392 = vpack.c.b16 %v1298, %v1297
    %v1393 = vpack.c.b16 %v1300, %v1299
    %v1394 = vpack.c.b16 %v1302, %v1301
    %v1395 = vpack.c.b16 %v1304, %v1303
    %v1396 = vpack.c.b16 %v1306, %v1305
    %v1397 = vpack.c.b16 %v1308, %v1307
    %v1398 = vpack.c.b16 %v1310, %v1309
    %v1399 = vpack.c.b16 %v1312, %v1311
    %v1400 = vpack.c.b16 %v1314, %v1313
    %v1401 = vpack.c.b16 %v1316, %v1315
    %v1402 = vpack.c.b16 %v1318, %v1317
    %v1403 = vpack.c.b16 %v1320, %v1319
    %v1404 = vpack.c.b16 %v1322, %v1321
    %v1405 = vpack.c.b16 %v1324, %v1323
    %v1406 = vpack.c.b16 %v1326, %v1325
    %v1407 = vpack.c.b16 %v1328, %v1327
    %v1408 = vpack.c.b16 %v1330, %v1329
    %v1409 = vpack.c.b16 %v1332, %v1331
    %v1410 = vpack.c.b16 %v1334, %v1333
    %v1411 = vpack.c.b16 %v1336, %v1335
    %v1412 = vpack.c.b16 %v1338, %v1337
    %v1413 = vpack.c.b16 %v1340, %v1339
    %v1414 = vpack.c.b16 %v1342, %v1341
    %v1415 = vpack.c.b16 %v1344, %v1343
    %v1416 = vpack.c.b16 %v1346, %v1345
    %v1417 = vpack.c.b16 %v1348, %v1347
    %v1418 = vpack.c.b16 %v1350, %v1349
    %v1419 = vpack.c.b16 %v1352, %v1351
    %v1420 = vpack.c.b16 %v1354, %v1353
    %v1421 = vpack.c.b16 %v1356, %v1355
    %v1422 = vpack.c.b16 %v1358, %v1357
    %1487 = vmatprep.subr.bf16.mxu0 0
    %1488 = vmatpush1.bf16.msra.mxu0 %v1359
    %1489 = vmatprep.subr.bf16.mxu0 0
    %1490 = vmatpush1.bf16.msra.mxu0 %v1360
    %1491 = vmatprep.subr.bf16.mxu0 0
    %1492 = vmatpush1.bf16.msra.mxu0 %v1361
    %1493 = vmatprep.subr.bf16.mxu0 0
    %1494 = vmatpush1.bf16.msra.mxu0 %v1362
    %1495 = vmatprep.subr.bf16.mxu0 0
    %1496 = vmatpush1.bf16.msra.mxu0 %v1363
    %1497 = vmatprep.subr.bf16.mxu0 0
    %1498 = vmatpush1.bf16.msra.mxu0 %v1364
    %1499 = vmatprep.subr.bf16.mxu0 0
    %1500 = vmatpush1.bf16.msra.mxu0 %v1365
    %1501 = vmatprep.subr.bf16.mxu0 0
    %1502 = vmatpush1.bf16.msra.mxu0 %v1366
    %1503 = vmatprep.subr.bf16.mxu0 0
    %1504 = vmatpush1.bf16.msra.mxu0 %v1367
    %1505 = vmatprep.subr.bf16.mxu0 0
    %1506 = vmatpush1.bf16.msra.mxu0 %v1368
    %1507 = vmatprep.subr.bf16.mxu0 0
    %1508 = vmatpush1.bf16.msra.mxu0 %v1369
    %1509 = vmatprep.subr.bf16.mxu0 0
    %1510 = vmatpush1.bf16.msra.mxu0 %v1370
    %1511 = vmatprep.subr.bf16.mxu0 0
    %1512 = vmatpush1.bf16.msra.mxu0 %v1371
    %1513 = vmatprep.subr.bf16.mxu0 0
    %1514 = vmatpush1.bf16.msra.mxu0 %v1372
    %1515 = vmatprep.subr.bf16.mxu0 0
    %1516 = vmatpush1.bf16.msra.mxu0 %v1373
    %1517 = vmatprep.subr.bf16.mxu0 0
    %1518 = vmatpush1.bf16.msra.mxu0 %v1374
    %1519 = vmatprep.mubr.bf16.mxu0 %v80
    %1520 = vmatmul.mubr.bf16.gmra.mrb[0].mxu0 %v79
    %v1521 = vpop.f32.mrb[0].mxu0
    %v1522 = vadd.f32 %v1082, %v1521
    %v1523 = vpop.f32.mrb[0].mxu0
    %v1524 = vpop.f32.mrb[0].mxu0
    %v1525 = vadd.f32 %v1085, %v1524
    %v1526 = vpop.f32.mrb[0].mxu0
    %1527 = vmatprep.mubr.bf16.mxu0 %v82
    %1528 = vmatmul.mubr.bf16.gmra.mrb[0].mxu0 %v81
    %v1529 = vpop.f32.mrb[0].mxu0
    %v1530 = vadd.f32 %v1090, %v1529
    %v1531 = vpop.f32.mrb[0].mxu0
    %v1532 = vpop.f32.mrb[0].mxu0
    %v1533 = vadd.f32 %v1093, %v1532
    %v1534 = vpop.f32.mrb[0].mxu0
    %1535 = vmatprep.mubr.bf16.mxu0 %v84
    %1536 = vmatmul.mubr.bf16.gmra.mrb[0].mxu0 %v83
    %v1537 = vpop.f32.mrb[0].mxu0
    %v1538 = vadd.f32 %v1098, %v1537
    %v1539 = vpop.f32.mrb[0].mxu0
    %v1540 = vpop.f32.mrb[0].mxu0
    %v1541 = vpop.f32.mrb[0].mxu0
    %1542 = vdwg.mxu0
    %1543 = vmatprep.subr.bf16.mxu0 0
    %1544 = vmatpush1.bf16.msra.mxu0 %v1375
    %1545 = vmatprep.subr.bf16.mxu0 0
    %1546 = vmatpush1.bf16.msra.mxu0 %v1376
    %1547 = vmatprep.subr.bf16.mxu0 0
    %1548 = vmatpush1.bf16.msra.mxu0 %v1377
    %1549 = vmatprep.subr.bf16.mxu0 0
    %1550 = vmatpush1.bf16.msra.mxu0 %v1378
    %1551 = vmatprep.subr.bf16.mxu0 0
    %1552 = vmatpush1.bf16.msra.mxu0 %v1379
    %1553 = vmatprep.subr.bf16.mxu0 0
    %1554 = vmatpush1.bf16.msra.mxu0 %v1380
    %1555 = vmatprep.subr.bf16.mxu0 0
    %1556 = vmatpush1.bf16.msra.mxu0 %v1381
    %1557 = vmatprep.subr.bf16.mxu0 0
    %1558 = vmatpush1.bf16.msra.mxu0 %v1382
    %1559 = vmatprep.subr.bf16.mxu0 0
    %1560 = vmatpush1.bf16.msra.mxu0 %v1383
    %1561 = vmatprep.subr.bf16.mxu0 0
    %1562 = vmatpush1.bf16.msra.mxu0 %v1384
    %1563 = vmatprep.subr.bf16.mxu0 0
    %1564 = vmatpush1.bf16.msra.mxu0 %v1385
    %1565 = vmatprep.subr.bf16.mxu0 0
    %1566 = vmatpush1.bf16.msra.mxu0 %v1386
    %1567 = vmatprep.subr.bf16.mxu0 0
    %1568 = vmatpush1.bf16.msra.mxu0 %v1387
    %1569 = vmatprep.subr.bf16.mxu0 0
    %1570 = vmatpush1.bf16.msra.mxu0 %v1388
    %1571 = vmatprep.subr.bf16.mxu0 0
    %1572 = vmatpush1.bf16.msra.mxu0 %v1389
    %1573 = vmatprep.subr.bf16.mxu0 0
    %1574 = vmatpush1.bf16.msra.mxu0 %v1390
    %1575 = vmatprep.mubr.bf16.mxu0 %v131
    %1576 = vmatmul.mubr.bf16.gmra.mrb[0].mxu0 %v130
    %v1577 = vpop.f32.mrb[0].mxu0
    %v1578 = vadd.f32 %v1522, %v1577
    %v1579 = vpop.f32.mrb[0].mxu0
    %v1580 = vpop.f32.mrb[0].mxu0
    %v1581 = vadd.f32 %v1525, %v1580
    %v1582 = vpop.f32.mrb[0].mxu0
    %1583 = vmatprep.mubr.bf16.mxu0 %v133
    %1584 = vmatmul.mubr.bf16.gmra.mrb[0].mxu0 %v132
    %v1585 = vpop.f32.mrb[0].mxu0
    %v1586 = vadd.f32 %v1530, %v1585
    %v1587 = vpop.f32.mrb[0].mxu0
    %v1588 = vpop.f32.mrb[0].mxu0
    %v1589 = vadd.f32 %v1533, %v1588
    %v1590 = vpop.f32.mrb[0].mxu0
    %1591 = vmatprep.mubr.bf16.mxu0 %v135
    %1592 = vmatmul.mubr.bf16.gmra.mrb[0].mxu0 %v134
    %v1593 = vpop.f32.mrb[0].mxu0
    %v1594 = vadd.f32 %v1538, %v1593
    %v1595 = vpop.f32.mrb[0].mxu0
    %v1596 = vpop.f32.mrb[0].mxu0
    %v1597 = vpop.f32.mrb[0].mxu0
    %1598 = vdwg.mxu0
    %1599 = vmatprep.subr.bf16.mxu0 0
    %1600 = vmatpush1.bf16.msra.mxu0 %v1391
    %1601 = vmatprep.subr.bf16.mxu0 0
    %1602 = vmatpush1.bf16.msra.mxu0 %v1392
    %1603 = vmatprep.subr.bf16.mxu0 0
    %1604 = vmatpush1.bf16.msra.mxu0 %v1393
    %1605 = vmatprep.subr.bf16.mxu0 0
    %1606 = vmatpush1.bf16.msra.mxu0 %v1394
    %1607 = vmatprep.subr.bf16.mxu0 0
    %1608 = vmatpush1.bf16.msra.mxu0 %v1395
    %1609 = vmatprep.subr.bf16.mxu0 0
    %1610 = vmatpush1.bf16.msra.mxu0 %v1396
    %1611 = vmatprep.subr.bf16.mxu0 0
    %1612 = vmatpush1.bf16.msra.mxu0 %v1397
    %1613 = vmatprep.subr.bf16.mxu0 0
    %1614 = vmatpush1.bf16.msra.mxu0 %v1398
    %1615 = vmatprep.subr.bf16.mxu0 0
    %1616 = vmatpush1.bf16.msra.mxu0 %v1399
    %1617 = vmatprep.subr.bf16.mxu0 0
    %1618 = vmatpush1.bf16.msra.mxu0 %v1400
    %1619 = vmatprep.subr.bf16.mxu0 0
    %1620 = vmatpush1.bf16.msra.mxu0 %v1401
    %1621 = vmatprep.subr.bf16.mxu0 0
    %1622 = vmatpush1.bf16.msra.mxu0 %v1402
    %1623 = vmatprep.subr.bf16.mxu0 0
    %1624 = vmatpush1.bf16.msra.mxu0 %v1403
    %1625 = vmatprep.subr.bf16.mxu0 0
    %1626 = vmatpush1.bf16.msra.mxu0 %v1404
    %1627 = vmatprep.subr.bf16.mxu0 0
    %1628 = vmatpush1.bf16.msra.mxu0 %v1405
    %1629 = vmatprep.subr.bf16.mxu0 0
    %1630 = vmatpush1.bf16.msra.mxu0 %v1406
    %1631 = vmatprep.mubr.bf16.mxu0 %v182
    %1632 = vmatmul.mubr.bf16.gmra.mrb[0].mxu0 %v181
    %v1633 = vpop.f32.mrb[0].mxu0
    %v1634 = vadd.f32 %v1578, %v1633
    %v1635 = vpop.f32.mrb[0].mxu0
    %v1636 = vpop.f32.mrb[0].mxu0
    %v1637 = vadd.f32 %v1581, %v1636
    %v1638 = vpop.f32.mrb[0].mxu0
    %1639 = vmatprep.mubr.bf16.mxu0 %v184
    %1640 = vmatmul.mubr.bf16.gmra.mrb[0].mxu0 %v183
    %v1641 = vpop.f32.mrb[0].mxu0
    %v1642 = vadd.f32 %v1586, %v1641
    %v1643 = vpop.f32.mrb[0].mxu0
    %v1644 = vpop.f32.mrb[0].mxu0
    %v1645 = vadd.f32 %v1589, %v1644
    %v1646 = vpop.f32.mrb[0].mxu0
    %1647 = vmatprep.mubr.bf16.mxu0 %v186
    %1648 = vmatmul.mubr.bf16.gmra.mrb[0].mxu0 %v185
    %v1649 = vpop.f32.mrb[0].mxu0
    %v1650 = vadd.f32 %v1594, %v1649
    %v1651 = vpop.f32.mrb[0].mxu0
    %v1652 = vpop.f32.mrb[0].mxu0
    %v1653 = vpop.f32.mrb[0].mxu0
    %1654 = vdwg.mxu0
    %1655 = vmatprep.subr.bf16.mxu0 0
    %1656 = vmatpush1.bf16.msra.mxu0 %v1407
    %1657 = vmatprep.subr.bf16.mxu0 0
    %1658 = vmatpush1.bf16.msra.mxu0 %v1408
    %1659 = vmatprep.subr.bf16.mxu0 0
    %1660 = vmatpush1.bf16.msra.mxu0 %v1409
    %1661 = vmatprep.subr.bf16.mxu0 0
    %1662 = vmatpush1.bf16.msra.mxu0 %v1410
    %1663 = vmatprep.subr.bf16.mxu0 0
    %1664 = vmatpush1.bf16.msra.mxu0 %v1411
    %1665 = vmatprep.subr.bf16.mxu0 0
    %1666 = vmatpush1.bf16.msra.mxu0 %v1412
    %1667 = vmatprep.subr.bf16.mxu0 0
    %1668 = vmatpush1.bf16.msra.mxu0 %v1413
    %1669 = vmatprep.subr.bf16.mxu0 0
    %1670 = vmatpush1.bf16.msra.mxu0 %v1414
    %1671 = vmatprep.subr.bf16.mxu0 0
    %1672 = vmatpush1.bf16.msra.mxu0 %v1415
    %1673 = vmatprep.subr.bf16.mxu0 0
    %1674 = vmatpush1.bf16.msra.mxu0 %v1416
    %1675 = vmatprep.subr.bf16.mxu0 0
    %1676 = vmatpush1.bf16.msra.mxu0 %v1417
    %1677 = vmatprep.subr.bf16.mxu0 0
    %1678 = vmatpush1.bf16.msra.mxu0 %v1418
    %1679 = vmatprep.subr.bf16.mxu0 0
    %1680 = vmatpush1.bf16.msra.mxu0 %v1419
    %1681 = vmatprep.subr.bf16.mxu0 0
    %1682 = vmatpush1.bf16.msra.mxu0 %v1420
    %1683 = vmatprep.subr.bf16.mxu0 0
    %1684 = vmatpush1.bf16.msra.mxu0 %v1421
    %1685 = vmatprep.subr.bf16.mxu0 0
    %1686 = vmatpush1.bf16.msra.mxu0 %v1422
    %1687 = vmatprep.mubr.bf16.mxu0 %v233
    %1688 = vmatmul.mubr.bf16.gmra.mrb[0].mxu0 %v232
    %v1689 = vpop.f32.mrb[0].mxu0
    %v1690 = vadd.f32 %v1634, %v1689
    %v1691 = vpop.f32.mrb[0].mxu0
    %v1692 = vpop.f32.mrb[0].mxu0
    %v1693 = vadd.f32 %v1637, %v1692
    %v1694 = vpop.f32.mrb[0].mxu0
    %1695 = vmatprep.mubr.bf16.mxu0 %v235
    %1696 = vmatmul.mubr.bf16.gmra.mrb[0].mxu0 %v234
    %v1697 = vpop.f32.mrb[0].mxu0
    %v1698 = vadd.f32 %v1642, %v1697
    %v1699 = vpop.f32.mrb[0].mxu0
    %v1700 = vpop.f32.mrb[0].mxu0
    %v1701 = vadd.f32 %v1645, %v1700
    %v1702 = vpop.f32.mrb[0].mxu0
    %1703 = vmatprep.mubr.bf16.mxu0 %v237
    %1704 = vmatmul.mubr.bf16.gmra.mrb[0].mxu0 %v236
    %v1705 = vpop.f32.mrb[0].mxu0
    %v1706 = vadd.f32 %v1650, %v1705
    %v1707 = vpop.f32.mrb[0].mxu0
    %v1708 = vpop.f32.mrb[0].mxu0
    %v1709 = vpop.f32.mrb[0].mxu0
    %1710 = vdwg.mxu0
    %s1711 = scalar_lea.vmem [#allocation2], 1024
    %v1712 = vld [vmem:[%s1711] sm:$0xf]
    %v1713 = vld [vmem:[%s1711 + $0x4] sm:$0xf]
    %v1714 = vld [vmem:[%s1711 + $0x8] sm:$0xf]
    %v1715 = vld [vmem:[%s1711 + $0xc] sm:$0xf]
    %v1716 = vld [vmem:[%s1711 + $0x10] sm:$0xf]
    %v1717 = vld [vmem:[%s1711 + $0x14] sm:$0xf]
    %v1718 = vld [vmem:[%s1711 + $0x18] sm:$0xf]
    %v1719 = vld [vmem:[%s1711 + $0x1c] sm:$0xf]
    %v1720 = vld [vmem:[%s1711 + $0x20] sm:$0xf]
    %v1721 = vld [vmem:[%s1711 + $0x24] sm:$0xf]
    %v1722 = vld [vmem:[%s1711 + $0x28] sm:$0xf]
    %v1723 = vld [vmem:[%s1711 + $0x2c] sm:$0xf]
    %v1724 = vld [vmem:[%s1711 + $0x30] sm:$0xf]
    %v1725 = vld [vmem:[%s1711 + $0x34] sm:$0xf]
    %v1726 = vld [vmem:[%s1711 + $0x38] sm:$0xf]
    %v1727 = vld [vmem:[%s1711 + $0x3c] sm:$0xf]
    %v1728 = vld [vmem:[%s1711 + $0x40] sm:$0xf]
    %v1729 = vld [vmem:[%s1711 + $0x44] sm:$0xf]
    %v1730 = vld [vmem:[%s1711 + $0x48] sm:$0xf]
    %v1731 = vld [vmem:[%s1711 + $0x4c] sm:$0xf]
    %v1732 = vld [vmem:[%s1711 + $0x50] sm:$0xf]
    %v1733 = vld [vmem:[%s1711 + $0x54] sm:$0xf]
    %v1734 = vld [vmem:[%s1711 + $0x58] sm:$0xf]
    %v1735 = vld [vmem:[%s1711 + $0x5c] sm:$0xf]
    %v1736 = vld [vmem:[%s1711 + $0x60] sm:$0xf]
    %v1737 = vld [vmem:[%s1711 + $0x64] sm:$0xf]
    %v1738 = vld [vmem:[%s1711 + $0x68] sm:$0xf]
    %v1739 = vld [vmem:[%s1711 + $0x6c] sm:$0xf]
    %v1740 = vld [vmem:[%s1711 + $0x70] sm:$0xf]
    %v1741 = vld [vmem:[%s1711 + $0x74] sm:$0xf]
    %v1742 = vld [vmem:[%s1711 + $0x78] sm:$0xf]
    %v1743 = vld [vmem:[%s1711 + $0x7c] sm:$0xf]
    %v1744 = vld [vmem:[%s1711 + $0x80] sm:$0xf]
    %v1745 = vld [vmem:[%s1711 + $0x84] sm:$0xf]
    %v1746 = vld [vmem:[%s1711 + $0x88] sm:$0xf]
    %v1747 = vld [vmem:[%s1711 + $0x8c] sm:$0xf]
    %v1748 = vld [vmem:[%s1711 + $0x90] sm:$0xf]
    %v1749 = vld [vmem:[%s1711 + $0x94] sm:$0xf]
    %v1750 = vld [vmem:[%s1711 + $0x98] sm:$0xf]
    %v1751 = vld [vmem:[%s1711 + $0x9c] sm:$0xf]
    %v1752 = vld [vmem:[%s1711 + $0xa0] sm:$0xf]
    %v1753 = vld [vmem:[%s1711 + $0xa4] sm:$0xf]
    %v1754 = vld [vmem:[%s1711 + $0xa8] sm:$0xf]
    %v1755 = vld [vmem:[%s1711 + $0xac] sm:$0xf]
    %v1756 = vld [vmem:[%s1711 + $0xb0] sm:$0xf]
    %v1757 = vld [vmem:[%s1711 + $0xb4] sm:$0xf]
    %v1758 = vld [vmem:[%s1711 + $0xb8] sm:$0xf]
    %v1759 = vld [vmem:[%s1711 + $0xbc] sm:$0xf]
    %v1760 = vld [vmem:[%s1711 + $0xc0] sm:$0xf]
    %v1761 = vld [vmem:[%s1711 + $0xc4] sm:$0xf]
    %v1762 = vld [vmem:[%s1711 + $0xc8] sm:$0xf]
    %v1763 = vld [vmem:[%s1711 + $0xcc] sm:$0xf]
    %v1764 = vld [vmem:[%s1711 + $0xd0] sm:$0xf]
    %v1765 = vld [vmem:[%s1711 + $0xd4] sm:$0xf]
    %v1766 = vld [vmem:[%s1711 + $0xd8] sm:$0xf]
    %v1767 = vld [vmem:[%s1711 + $0xdc] sm:$0xf]
    %v1768 = vld [vmem:[%s1711 + $0xe0] sm:$0xf]
    %v1769 = vld [vmem:[%s1711 + $0xe4] sm:$0xf]
    %v1770 = vld [vmem:[%s1711 + $0xe8] sm:$0xf]
    %v1771 = vld [vmem:[%s1711 + $0xec] sm:$0xf]
    %v1772 = vld [vmem:[%s1711 + $0xf0] sm:$0xf]
    %v1773 = vld [vmem:[%s1711 + $0xf4] sm:$0xf]
    %v1774 = vld [vmem:[%s1711 + $0xf8] sm:$0xf]
    %v1775 = vld [vmem:[%s1711 + $0xfc] sm:$0xf]
    %v1776 = vld [vmem:[%s1711 + $0x100] sm:$0xf]
    %v1777 = vld [vmem:[%s1711 + $0x104] sm:$0xf]
    %v1778 = vld [vmem:[%s1711 + $0x108] sm:$0xf]
    %v1779 = vld [vmem:[%s1711 + $0x10c] sm:$0xf]
    %v1780 = vld [vmem:[%s1711 + $0x110] sm:$0xf]
    %v1781 = vld [vmem:[%s1711 + $0x114] sm:$0xf]
    %v1782 = vld [vmem:[%s1711 + $0x118] sm:$0xf]
    %v1783 = vld [vmem:[%s1711 + $0x11c] sm:$0xf]
    %v1784 = vld [vmem:[%s1711 + $0x120] sm:$0xf]
    %v1785 = vld [vmem:[%s1711 + $0x124] sm:$0xf]
    %v1786 = vld [vmem:[%s1711 + $0x128] sm:$0xf]
    %v1787 = vld [vmem:[%s1711 + $0x12c] sm:$0xf]
    %v1788 = vld [vmem:[%s1711 + $0x130] sm:$0xf]
    %v1789 = vld [vmem:[%s1711 + $0x134] sm:$0xf]
    %v1790 = vld [vmem:[%s1711 + $0x138] sm:$0xf]
    %v1791 = vld [vmem:[%s1711 + $0x13c] sm:$0xf]
    %v1792 = vld [vmem:[%s1711 + $0x140] sm:$0xf]
    %v1793 = vld [vmem:[%s1711 + $0x144] sm:$0xf]
    %v1794 = vld [vmem:[%s1711 + $0x148] sm:$0xf]
    %v1795 = vld [vmem:[%s1711 + $0x14c] sm:$0xf]
    %v1796 = vld [vmem:[%s1711 + $0x150] sm:$0xf]
    %v1797 = vld [vmem:[%s1711 + $0x154] sm:$0xf]
    %v1798 = vld [vmem:[%s1711 + $0x158] sm:$0xf]
    %v1799 = vld [vmem:[%s1711 + $0x15c] sm:$0xf]
    %v1800 = vld [vmem:[%s1711 + $0x160] sm:$0xf]
    %v1801 = vld [vmem:[%s1711 + $0x164] sm:$0xf]
    %v1802 = vld [vmem:[%s1711 + $0x168] sm:$0xf]
    %v1803 = vld [vmem:[%s1711 + $0x16c] sm:$0xf]
    %v1804 = vld [vmem:[%s1711 + $0x170] sm:$0xf]
    %v1805 = vld [vmem:[%s1711 + $0x174] sm:$0xf]
    %v1806 = vld [vmem:[%s1711 + $0x178] sm:$0xf]
    %v1807 = vld [vmem:[%s1711 + $0x17c] sm:$0xf]
    %v1808 = vld [vmem:[%s1711 + $0x180] sm:$0xf]
    %v1809 = vld [vmem:[%s1711 + $0x184] sm:$0xf]
    %v1810 = vld [vmem:[%s1711 + $0x188] sm:$0xf]
    %v1811 = vld [vmem:[%s1711 + $0x18c] sm:$0xf]
    %v1812 = vld [vmem:[%s1711 + $0x190] sm:$0xf]
    %v1813 = vld [vmem:[%s1711 + $0x194] sm:$0xf]
    %v1814 = vld [vmem:[%s1711 + $0x198] sm:$0xf]
    %v1815 = vld [vmem:[%s1711 + $0x19c] sm:$0xf]
    %v1816 = vld [vmem:[%s1711 + $0x1a0] sm:$0xf]
    %v1817 = vld [vmem:[%s1711 + $0x1a4] sm:$0xf]
    %v1818 = vld [vmem:[%s1711 + $0x1a8] sm:$0xf]
    %v1819 = vld [vmem:[%s1711 + $0x1ac] sm:$0xf]
    %v1820 = vld [vmem:[%s1711 + $0x1b0] sm:$0xf]
    %v1821 = vld [vmem:[%s1711 + $0x1b4] sm:$0xf]
    %v1822 = vld [vmem:[%s1711 + $0x1b8] sm:$0xf]
    %v1823 = vld [vmem:[%s1711 + $0x1bc] sm:$0xf]
    %v1824 = vld [vmem:[%s1711 + $0x1c0] sm:$0xf]
    %v1825 = vld [vmem:[%s1711 + $0x1c4] sm:$0xf]
    %v1826 = vld [vmem:[%s1711 + $0x1c8] sm:$0xf]
    %v1827 = vld [vmem:[%s1711 + $0x1cc] sm:$0xf]
    %v1828 = vld [vmem:[%s1711 + $0x1d0] sm:$0xf]
    %v1829 = vld [vmem:[%s1711 + $0x1d4] sm:$0xf]
    %v1830 = vld [vmem:[%s1711 + $0x1d8] sm:$0xf]
    %v1831 = vld [vmem:[%s1711 + $0x1dc] sm:$0xf]
    %v1832 = vld [vmem:[%s1711 + $0x1e0] sm:$0xf]
    %v1833 = vld [vmem:[%s1711 + $0x1e4] sm:$0xf]
    %v1834 = vld [vmem:[%s1711 + $0x1e8] sm:$0xf]
    %v1835 = vld [vmem:[%s1711 + $0x1ec] sm:$0xf]
    %v1836 = vld [vmem:[%s1711 + $0x1f0] sm:$0xf]
    %v1837 = vld [vmem:[%s1711 + $0x1f4] sm:$0xf]
    %v1838 = vld [vmem:[%s1711 + $0x1f8] sm:$0xf]
    %v1839 = vld [vmem:[%s1711 + $0x1fc] sm:$0xf]
    %v1968 = vunpack.c.l.b16 %v1712
    %v1969 = vunpack.c.l.b16 %v1713
    %v1970 = vunpack.c.l.b16 %v1714
    %v1971 = vunpack.c.l.b16 %v1715
    %v1972 = vunpack.c.l.b16 %v1716
    %v1973 = vunpack.c.l.b16 %v1717
    %v1974 = vunpack.c.l.b16 %v1718
    %v1975 = vunpack.c.l.b16 %v1719
    %v1976 = vunpack.c.l.b16 %v1720
    %v1977 = vunpack.c.l.b16 %v1721
    %v1978 = vunpack.c.l.b16 %v1722
    %v1979 = vunpack.c.l.b16 %v1723
    %v1980 = vunpack.c.l.b16 %v1724
    %v1981 = vunpack.c.l.b16 %v1725
    %v1982 = vunpack.c.l.b16 %v1726
    %v1983 = vunpack.c.l.b16 %v1727
    %v1984 = vunpack.c.l.b16 %v1728
    %v1985 = vunpack.c.l.b16 %v1729
    %v1986 = vunpack.c.l.b16 %v1730
    %v1987 = vunpack.c.l.b16 %v1731
    %v1988 = vunpack.c.l.b16 %v1732
    %v1989 = vunpack.c.l.b16 %v1733
    %v1990 = vunpack.c.l.b16 %v1734
    %v1991 = vunpack.c.l.b16 %v1735
    %v1992 = vunpack.c.l.b16 %v1736
    %v1993 = vunpack.c.l.b16 %v1737
    %v1994 = vunpack.c.l.b16 %v1738
    %v1995 = vunpack.c.l.b16 %v1739
    %v1996 = vunpack.c.l.b16 %v1740
    %v1997 = vunpack.c.l.b16 %v1741
    %v1998 = vunpack.c.l.b16 %v1742
    %v1999 = vunpack.c.l.b16 %v1743
    %v2000 = vunpack.c.l.b16 %v1744
    %v2001 = vunpack.c.l.b16 %v1745
    %v2002 = vunpack.c.l.b16 %v1746
    %v2003 = vunpack.c.l.b16 %v1747
    %v2004 = vunpack.c.l.b16 %v1748
    %v2005 = vunpack.c.l.b16 %v1749
    %v2006 = vunpack.c.l.b16 %v1750
    %v2007 = vunpack.c.l.b16 %v1751
    %v2008 = vunpack.c.l.b16 %v1752
    %v2009 = vunpack.c.l.b16 %v1753
    %v2010 = vunpack.c.l.b16 %v1754
    %v2011 = vunpack.c.l.b16 %v1755
    %v2012 = vunpack.c.l.b16 %v1756
    %v2013 = vunpack.c.l.b16 %v1757
    %v2014 = vunpack.c.l.b16 %v1758
    %v2015 = vunpack.c.l.b16 %v1759
    %v2016 = vunpack.c.l.b16 %v1760
    %v2017 = vunpack.c.l.b16 %v1761
    %v2018 = vunpack.c.l.b16 %v1762
    %v2019 = vunpack.c.l.b16 %v1763
    %v2020 = vunpack.c.l.b16 %v1764
    %v2021 = vunpack.c.l.b16 %v1765
    %v2022 = vunpack.c.l.b16 %v1766
    %v2023 = vunpack.c.l.b16 %v1767
    %v2024 = vunpack.c.l.b16 %v1768
    %v2025 = vunpack.c.l.b16 %v1769
    %v2026 = vunpack.c.l.b16 %v1770
    %v2027 = vunpack.c.l.b16 %v1771
    %v2028 = vunpack.c.l.b16 %v1772
    %v2029 = vunpack.c.l.b16 %v1773
    %v2030 = vunpack.c.l.b16 %v1774
    %v2031 = vunpack.c.l.b16 %v1775
    %v2032 = vunpack.c.l.b16 %v1776
    %v2033 = vunpack.c.l.b16 %v1777
    %v2034 = vunpack.c.l.b16 %v1778
    %v2035 = vunpack.c.l.b16 %v1779
    %v2036 = vunpack.c.l.b16 %v1780
    %v2037 = vunpack.c.l.b16 %v1781
    %v2038 = vunpack.c.l.b16 %v1782
    %v2039 = vunpack.c.l.b16 %v1783
    %v2040 = vunpack.c.l.b16 %v1784
    %v2041 = vunpack.c.l.b16 %v1785
    %v2042 = vunpack.c.l.b16 %v1786
    %v2043 = vunpack.c.l.b16 %v1787
    %v2044 = vunpack.c.l.b16 %v1788
    %v2045 = vunpack.c.l.b16 %v1789
    %v2046 = vunpack.c.l.b16 %v1790
    %v2047 = vunpack.c.l.b16 %v1791
    %v2048 = vunpack.c.l.b16 %v1792
    %v2049 = vunpack.c.l.b16 %v1793
    %v2050 = vunpack.c.l.b16 %v1794
    %v2051 = vunpack.c.l.b16 %v1795
    %v2052 = vunpack.c.l.b16 %v1796
    %v2053 = vunpack.c.l.b16 %v1797
    %v2054 = vunpack.c.l.b16 %v1798
    %v2055 = vunpack.c.l.b16 %v1799
    %v2056 = vunpack.c.l.b16 %v1800
    %v2057 = vunpack.c.l.b16 %v1801
    %v2058 = vunpack.c.l.b16 %v1802
    %v2059 = vunpack.c.l.b16 %v1803
    %v2060 = vunpack.c.l.b16 %v1804
    %v2061 = vunpack.c.l.b16 %v1805
    %v2062 = vunpack.c.l.b16 %v1806
    %v2063 = vunpack.c.l.b16 %v1807
    %v2064 = vunpack.c.l.b16 %v1808
    %v2065 = vunpack.c.l.b16 %v1809
    %v2066 = vunpack.c.l.b16 %v1810
    %v2067 = vunpack.c.l.b16 %v1811
    %v2068 = vunpack.c.l.b16 %v1812
    %v2069 = vunpack.c.l.b16 %v1813
    %v2070 = vunpack.c.l.b16 %v1814
    %v2071 = vunpack.c.l.b16 %v1815
    %v2072 = vunpack.c.l.b16 %v1816
    %v2073 = vunpack.c.l.b16 %v1817
    %v2074 = vunpack.c.l.b16 %v1818
    %v2075 = vunpack.c.l.b16 %v1819
    %v2076 = vunpack.c.l.b16 %v1820
    %v2077 = vunpack.c.l.b16 %v1821
    %v2078 = vunpack.c.l.b16 %v1822
    %v2079 = vunpack.c.l.b16 %v1823
    %v2080 = vunpack.c.l.b16 %v1824
    %v2081 = vunpack.c.l.b16 %v1825
    %v2082 = vunpack.c.l.b16 %v1826
    %v2083 = vunpack.c.l.b16 %v1827
    %v2084 = vunpack.c.l.b16 %v1828
    %v2085 = vunpack.c.l.b16 %v1829
    %v2086 = vunpack.c.l.b16 %v1830
    %v2087 = vunpack.c.l.b16 %v1831
    %v2088 = vunpack.c.l.b16 %v1832
    %v2089 = vunpack.c.l.b16 %v1833
    %v2090 = vunpack.c.l.b16 %v1834
    %v2091 = vunpack.c.l.b16 %v1835
    %v2092 = vunpack.c.l.b16 %v1836
    %v2093 = vunpack.c.l.b16 %v1837
    %v2094 = vunpack.c.l.b16 %v1838
    %v2095 = vunpack.c.l.b16 %v1839
    %v2096 = vpack.c.b16 %v1969, %v1968
    %v2097 = vpack.c.b16 %v1971, %v1970
    %v2098 = vpack.c.b16 %v1973, %v1972
    %v2099 = vpack.c.b16 %v1975, %v1974
    %v2100 = vpack.c.b16 %v1977, %v1976
    %v2101 = vpack.c.b16 %v1979, %v1978
    %v2102 = vpack.c.b16 %v1981, %v1980
    %v2103 = vpack.c.b16 %v1983, %v1982
    %v2104 = vpack.c.b16 %v1985, %v1984
    %v2105 = vpack.c.b16 %v1987, %v1986
    %v2106 = vpack.c.b16 %v1989, %v1988
    %v2107 = vpack.c.b16 %v1991, %v1990
    %v2108 = vpack.c.b16 %v1993, %v1992
    %v2109 = vpack.c.b16 %v1995, %v1994
    %v2110 = vpack.c.b16 %v1997, %v1996
    %v2111 = vpack.c.b16 %v1999, %v1998
    %v2112 = vpack.c.b16 %v2001, %v2000
    %v2113 = vpack.c.b16 %v2003, %v2002
    %v2114 = vpack.c.b16 %v2005, %v2004
    %v2115 = vpack.c.b16 %v2007, %v2006
    %v2116 = vpack.c.b16 %v2009, %v2008
    %v2117 = vpack.c.b16 %v2011, %v2010
    %v2118 = vpack.c.b16 %v2013, %v2012
    %v2119 = vpack.c.b16 %v2015, %v2014
    %v2120 = vpack.c.b16 %v2017, %v2016
    %v2121 = vpack.c.b16 %v2019, %v2018
    %v2122 = vpack.c.b16 %v2021, %v2020
    %v2123 = vpack.c.b16 %v2023, %v2022
    %v2124 = vpack.c.b16 %v2025, %v2024
    %v2125 = vpack.c.b16 %v2027, %v2026
    %v2126 = vpack.c.b16 %v2029, %v2028
    %v2127 = vpack.c.b16 %v2031, %v2030
    %v2128 = vpack.c.b16 %v2033, %v2032
    %v2129 = vpack.c.b16 %v2035, %v2034
    %v2130 = vpack.c.b16 %v2037, %v2036
    %v2131 = vpack.c.b16 %v2039, %v2038
    %v2132 = vpack.c.b16 %v2041, %v2040
    %v2133 = vpack.c.b16 %v2043, %v2042
    %v2134 = vpack.c.b16 %v2045, %v2044
    %v2135 = vpack.c.b16 %v2047, %v2046
    %v2136 = vpack.c.b16 %v2049, %v2048
    %v2137 = vpack.c.b16 %v2051, %v2050
    %v2138 = vpack.c.b16 %v2053, %v2052
    %v2139 = vpack.c.b16 %v2055, %v2054
    %v2140 = vpack.c.b16 %v2057, %v2056
    %v2141 = vpack.c.b16 %v2059, %v2058
    %v2142 = vpack.c.b16 %v2061, %v2060
    %v2143 = vpack.c.b16 %v2063, %v2062
    %v2144 = vpack.c.b16 %v2065, %v2064
    %v2145 = vpack.c.b16 %v2067, %v2066
    %v2146 = vpack.c.b16 %v2069, %v2068
    %v2147 = vpack.c.b16 %v2071, %v2070
    %v2148 = vpack.c.b16 %v2073, %v2072
    %v2149 = vpack.c.b16 %v2075, %v2074
    %v2150 = vpack.c.b16 %v2077, %v2076
    %v2151 = vpack.c.b16 %v2079, %v2078
    %v2152 = vpack.c.b16 %v2081, %v2080
    %v2153 = vpack.c.b16 %v2083, %v2082
    %v2154 = vpack.c.b16 %v2085, %v2084
    %v2155 = vpack.c.b16 %v2087, %v2086
    %v2156 = vpack.c.b16 %v2089, %v2088
    %v2157 = vpack.c.b16 %v2091, %v2090
    %v2158 = vpack.c.b16 %v2093, %v2092
    %v2159 = vpack.c.b16 %v2095, %v2094
    %2224 = vmatprep.subr.bf16.mxu0 0
    %2225 = vmatpush1.bf16.msra.mxu0 %v2096
    %2226 = vmatprep.subr.bf16.mxu0 0
    %2227 = vmatpush1.bf16.msra.mxu0 %v2097
    %2228 = vmatprep.subr.bf16.mxu0 0
    %2229 = vmatpush1.bf16.msra.mxu0 %v2098
    %2230 = vmatprep.subr.bf16.mxu0 0
    %2231 = vmatpush1.bf16.msra.mxu0 %v2099
    %2232 = vmatprep.subr.bf16.mxu0 0
    %2233 = vmatpush1.bf16.msra.mxu0 %v2100
    %2234 = vmatprep.subr.bf16.mxu0 0
    %2235 = vmatpush1.bf16.msra.mxu0 %v2101
    %2236 = vmatprep.subr.bf16.mxu0 0
    %2237 = vmatpush1.bf16.msra.mxu0 %v2102
    %2238 = vmatprep.subr.bf16.mxu0 0
    %2239 = vmatpush1.bf16.msra.mxu0 %v2103
    %2240 = vmatprep.subr.bf16.mxu0 0
    %2241 = vmatpush1.bf16.msra.mxu0 %v2104
    %2242 = vmatprep.subr.bf16.mxu0 0
    %2243 = vmatpush1.bf16.msra.mxu0 %v2105
    %2244 = vmatprep.subr.bf16.mxu0 0
    %2245 = vmatpush1.bf16.msra.mxu0 %v2106
    %2246 = vmatprep.subr.bf16.mxu0 0
    %2247 = vmatpush1.bf16.msra.mxu0 %v2107
    %2248 = vmatprep.subr.bf16.mxu0 0
    %2249 = vmatpush1.bf16.msra.mxu0 %v2108
    %2250 = vmatprep.subr.bf16.mxu0 0
    %2251 = vmatpush1.bf16.msra.mxu0 %v2109
    %2252 = vmatprep.subr.bf16.mxu0 0
    %2253 = vmatpush1.bf16.msra.mxu0 %v2110
    %2254 = vmatprep.subr.bf16.mxu0 0
    %2255 = vmatpush1.bf16.msra.mxu0 %v2111
    %2256 = vmatprep.mubr.bf16.mxu0 %v80
    %2257 = vmatmul.mubr.bf16.gmra.mrb[0].mxu0 %v79
    %v2258 = vpop.f32.mrb[0].mxu0
    %v2259 = vadd.f32 0.0, %v2258
    %v2260 = vpop.f32.mrb[0].mxu0
    %v2261 = vpop.f32.mrb[0].mxu0
    %v2262 = vadd.f32 0.0, %v2261
    %v2263 = vpop.f32.mrb[0].mxu0
    %2264 = vmatprep.mubr.bf16.mxu0 %v82
    %2265 = vmatmul.mubr.bf16.gmra.mrb[0].mxu0 %v81
    %v2266 = vpop.f32.mrb[0].mxu0
    %v2267 = vadd.f32 0.0, %v2266
    %v2268 = vpop.f32.mrb[0].mxu0
    %v2269 = vpop.f32.mrb[0].mxu0
    %v2270 = vadd.f32 0.0, %v2269
    %v2271 = vpop.f32.mrb[0].mxu0
    %2272 = vmatprep.mubr.bf16.mxu0 %v84
    %2273 = vmatmul.mubr.bf16.gmra.mrb[0].mxu0 %v83
    %v2274 = vpop.f32.mrb[0].mxu0
    %v2275 = vadd.f32 0.0, %v2274
    %v2276 = vpop.f32.mrb[0].mxu0
    %v2277 = vpop.f32.mrb[0].mxu0
    %v2278 = vpop.f32.mrb[0].mxu0
    %2279 = vdwg.mxu0
    %2280 = vmatprep.subr.bf16.mxu0 0
    %2281 = vmatpush1.bf16.msra.mxu0 %v2112
    %2282 = vmatprep.subr.bf16.mxu0 0
    %2283 = vmatpush1.bf16.msra.mxu0 %v2113
    %2284 = vmatprep.subr.bf16.mxu0 0
    %2285 = vmatpush1.bf16.msra.mxu0 %v2114
    %2286 = vmatprep.subr.bf16.mxu0 0
    %2287 = vmatpush1.bf16.msra.mxu0 %v2115
    %2288 = vmatprep.subr.bf16.mxu0 0
    %2289 = vmatpush1.bf16.msra.mxu0 %v2116
    %2290 = vmatprep.subr.bf16.mxu0 0
    %2291 = vmatpush1.bf16.msra.mxu0 %v2117
    %2292 = vmatprep.subr.bf16.mxu0 0
    %2293 = vmatpush1.bf16.msra.mxu0 %v2118
    %2294 = vmatprep.subr.bf16.mxu0 0
    %2295 = vmatpush1.bf16.msra.mxu0 %v2119
    %2296 = vmatprep.subr.bf16.mxu0 0
    %2297 = vmatpush1.bf16.msra.mxu0 %v2120
    %2298 = vmatprep.subr.bf16.mxu0 0
    %2299 = vmatpush1.bf16.msra.mxu0 %v2121
    %2300 = vmatprep.subr.bf16.mxu0 0
    %2301 = vmatpush1.bf16.msra.mxu0 %v2122
    %2302 = vmatprep.subr.bf16.mxu0 0
    %2303 = vmatpush1.bf16.msra.mxu0 %v2123
    %2304 = vmatprep.subr.bf16.mxu0 0
    %2305 = vmatpush1.bf16.msra.mxu0 %v2124
    %2306 = vmatprep.subr.bf16.mxu0 0
    %2307 = vmatpush1.bf16.msra.mxu0 %v2125
    %2308 = vmatprep.subr.bf16.mxu0 0
    %2309 = vmatpush1.bf16.msra.mxu0 %v2126
    %2310 = vmatprep.subr.bf16.mxu0 0
    %2311 = vmatpush1.bf16.msra.mxu0 %v2127
    %2312 = vmatprep.mubr.bf16.mxu0 %v131
    %2313 = vmatmul.mubr.bf16.gmra.mrb[0].mxu0 %v130
    %v2314 = vpop.f32.mrb[0].mxu0
    %v2315 = vadd.f32 %v2259, %v2314
    %v2316 = vpop.f32.mrb[0].mxu0
    %v2317 = vpop.f32.mrb[0].mxu0
    %v2318 = vadd.f32 %v2262, %v2317
    %v2319 = vpop.f32.mrb[0].mxu0
    %2320 = vmatprep.mubr.bf16.mxu0 %v133
    %2321 = vmatmul.mubr.bf16.gmra.mrb[0].mxu0 %v132
    %v2322 = vpop.f32.mrb[0].mxu0
    %v2323 = vadd.f32 %v2267, %v2322
    %v2324 = vpop.f32.mrb[0].mxu0
    %v2325 = vpop.f32.mrb[0].mxu0
    %v2326 = vadd.f32 %v2270, %v2325
    %v2327 = vpop.f32.mrb[0].mxu0
    %2328 = vmatprep.mubr.bf16.mxu0 %v135
    %2329 = vmatmul.mubr.bf16.gmra.mrb[0].mxu0 %v134
    %v2330 = vpop.f32.mrb[0].mxu0
    %v2331 = vadd.f32 %v2275, %v2330
    %v2332 = vpop.f32.mrb[0].mxu0
    %v2333 = vpop.f32.mrb[0].mxu0
    %v2334 = vpop.f32.mrb[0].mxu0
    %2335 = vdwg.mxu0
    %2336 = vmatprep.subr.bf16.mxu0 0
    %2337 = vmatpush1.bf16.msra.mxu0 %v2128
    %2338 = vmatprep.subr.bf16.mxu0 0
    %2339 = vmatpush1.bf16.msra.mxu0 %v2129
    %2340 = vmatprep.subr.bf16.mxu0 0
    %2341 = vmatpush1.bf16.msra.mxu0 %v2130
    %2342 = vmatprep.subr.bf16.mxu0 0
    %2343 = vmatpush1.bf16.msra.mxu0 %v2131
    %2344 = vmatprep.subr.bf16.mxu0 0
    %2345 = vmatpush1.bf16.msra.mxu0 %v2132
    %2346 = vmatprep.subr.bf16.mxu0 0
    %2347 = vmatpush1.bf16.msra.mxu0 %v2133
    %2348 = vmatprep.subr.bf16.mxu0 0
    %2349 = vmatpush1.bf16.msra.mxu0 %v2134
    %2350 = vmatprep.subr.bf16.mxu0 0
    %2351 = vmatpush1.bf16.msra.mxu0 %v2135
    %2352 = vmatprep.subr.bf16.mxu0 0
    %2353 = vmatpush1.bf16.msra.mxu0 %v2136
    %2354 = vmatprep.subr.bf16.mxu0 0
    %2355 = vmatpush1.bf16.msra.mxu0 %v2137
    %2356 = vmatprep.subr.bf16.mxu0 0
    %2357 = vmatpush1.bf16.msra.mxu0 %v2138
    %2358 = vmatprep.subr.bf16.mxu0 0
    %2359 = vmatpush1.bf16.msra.mxu0 %v2139
    %2360 = vmatprep.subr.bf16.mxu0 0
    %2361 = vmatpush1.bf16.msra.mxu0 %v2140
    %2362 = vmatprep.subr.bf16.mxu0 0
    %2363 = vmatpush1.bf16.msra.mxu0 %v2141
    %2364 = vmatprep.subr.bf16.mxu0 0
    %2365 = vmatpush1.bf16.msra.mxu0 %v2142
    %2366 = vmatprep.subr.bf16.mxu0 0
    %2367 = vmatpush1.bf16.msra.mxu0 %v2143
    %2368 = vmatprep.mubr.bf16.mxu0 %v182
    %2369 = vmatmul.mubr.bf16.gmra.mrb[0].mxu0 %v181
    %v2370 = vpop.f32.mrb[0].mxu0
    %v2371 = vadd.f32 %v2315, %v2370
    %v2372 = vpop.f32.mrb[0].mxu0
    %v2373 = vpop.f32.mrb[0].mxu0
    %v2374 = vadd.f32 %v2318, %v2373
    %v2375 = vpop.f32.mrb[0].mxu0
    %2376 = vmatprep.mubr.bf16.mxu0 %v184
    %2377 = vmatmul.mubr.bf16.gmra.mrb[0].mxu0 %v183
    %v2378 = vpop.f32.mrb[0].mxu0
    %v2379 = vadd.f32 %v2323, %v2378
    %v2380 = vpop.f32.mrb[0].mxu0
    %v2381 = vpop.f32.mrb[0].mxu0
    %v2382 = vadd.f32 %v2326, %v2381
    %v2383 = vpop.f32.mrb[0].mxu0
    %2384 = vmatprep.mubr.bf16.mxu0 %v186
    %2385 = vmatmul.mubr.bf16.gmra.mrb[0].mxu0 %v185
    %v2386 = vpop.f32.mrb[0].mxu0
    %v2387 = vadd.f32 %v2331, %v2386
    %v2388 = vpop.f32.mrb[0].mxu0
    %v2389 = vpop.f32.mrb[0].mxu0
    %v2390 = vpop.f32.mrb[0].mxu0
    %2391 = vdwg.mxu0
    %2392 = vmatprep.subr.bf16.mxu0 0
    %2393 = vmatpush1.bf16.msra.mxu0 %v2144
    %2394 = vmatprep.subr.bf16.mxu0 0
    %2395 = vmatpush1.bf16.msra.mxu0 %v2145
    %2396 = vmatprep.subr.bf16.mxu0 0
    %2397 = vmatpush1.bf16.msra.mxu0 %v2146
    %2398 = vmatprep.subr.bf16.mxu0 0
    %2399 = vmatpush1.bf16.msra.mxu0 %v2147
    %2400 = vmatprep.subr.bf16.mxu0 0
    %2401 = vmatpush1.bf16.msra.mxu0 %v2148
    %2402 = vmatprep.subr.bf16.mxu0 0
    %2403 = vmatpush1.bf16.msra.mxu0 %v2149
    %2404 = vmatprep.subr.bf16.mxu0 0
    %2405 = vmatpush1.bf16.msra.mxu0 %v2150
    %2406 = vmatprep.subr.bf16.mxu0 0
    %2407 = vmatpush1.bf16.msra.mxu0 %v2151
    %2408 = vmatprep.subr.bf16.mxu0 0
    %2409 = vmatpush1.bf16.msra.mxu0 %v2152
    %2410 = vmatprep.subr.bf16.mxu0 0
    %2411 = vmatpush1.bf16.msra.mxu0 %v2153
    %2412 = vmatprep.subr.bf16.mxu0 0
    %2413 = vmatpush1.bf16.msra.mxu0 %v2154
    %2414 = vmatprep.subr.bf16.mxu0 0
    %2415 = vmatpush1.bf16.msra.mxu0 %v2155
    %2416 = vmatprep.subr.bf16.mxu0 0
    %2417 = vmatpush1.bf16.msra.mxu0 %v2156
    %2418 = vmatprep.subr.bf16.mxu0 0
    %2419 = vmatpush1.bf16.msra.mxu0 %v2157
    %2420 = vmatprep.subr.bf16.mxu0 0
    %2421 = vmatpush1.bf16.msra.mxu0 %v2158
    %2422 = vmatprep.subr.bf16.mxu0 0
    %2423 = vmatpush1.bf16.msra.mxu0 %v2159
    %2424 = vmatprep.mubr.bf16.mxu0 %v233
    %2425 = vmatmul.mubr.bf16.gmra.mrb[0].mxu0 %v232
    %v2426 = vpop.f32.mrb[0].mxu0
    %v2427 = vadd.f32 %v2371, %v2426
    %v2428 = vpop.f32.mrb[0].mxu0
    %v2429 = vpop.f32.mrb[0].mxu0
    %v2430 = vadd.f32 %v2374, %v2429
    %v2431 = vpop.f32.mrb[0].mxu0
    %2432 = vmatprep.mubr.bf16.mxu0 %v235
    %2433 = vmatmul.mubr.bf16.gmra.mrb[0].mxu0 %v234
    %v2434 = vpop.f32.mrb[0].mxu0
    %v2435 = vadd.f32 %v2379, %v2434
    %v2436 = vpop.f32.mrb[0].mxu0
    %v2437 = vpop.f32.mrb[0].mxu0
    %v2438 = vadd.f32 %v2382, %v2437
    %v2439 = vpop.f32.mrb[0].mxu0
    %2440 = vmatprep.mubr.bf16.mxu0 %v237
    %2441 = vmatmul.mubr.bf16.gmra.mrb[0].mxu0 %v236
    %v2442 = vpop.f32.mrb[0].mxu0
    %v2443 = vadd.f32 %v2387, %v2442
    %v2444 = vpop.f32.mrb[0].mxu0
    %v2445 = vpop.f32.mrb[0].mxu0
    %v2446 = vpop.f32.mrb[0].mxu0
    %2447 = vdwg.mxu0
    %v2448 = vadd.f32 %v1690, %v2427
    %v2449 = vadd.f32 %v1693, %v2430
    %v2450 = vadd.f32 %v1698, %v2435
    %v2451 = vadd.f32 %v1701, %v2438
    %v2452 = vadd.f32 %v1706, %v2443
    %2453 = vst [vmem:[%s2] sm:$0xff] %v2448
    %2454 = vst [vmem:[%s2 + $0x8] sm:$0xff] %v2449
    %2455 = vst [vmem:[%s2 + $0x10] sm:$0xff] %v2450
    %2456 = vst [vmem:[%s2 + $0x18] sm:$0xff] %v2451
    %2457 = vst [vmem:[%s2 + $0x20] sm:$0xff] %v2452
    // Predicated region
    $region14: #{_lambda_.1} parent=1 // pred_check
      _
    $region15: #{_lambda_.1} parent=1 // pred_check_branch
      %2459 = sbr.rel (0) target = $region17
    $region16: #{_lambda_.1} parent=1 // pred_region
      _
    $region17: #{_lambda_.1} parent=1 // pred_fallthru
      _
    // Predicated region
    $region18: #{_lambda_.1} parent=1 // pred_check
      _
    $region19: #{_lambda_.1} parent=1 // pred_check_branch
      %2461 = sbr.rel (0) target = $region21
    $region20: #{_lambda_.1} parent=1 // pred_region
      _
    $region21: #{_lambda_.1} parent=1 // pred_fallthru
      _
    %2462 = vsyncpa [#allocation3], 1

</llo_original>
